<compile_context>
chip_gen: v7x
topology: tpu7x:2x2x1
jax: 0.10.0
libtpu: 0.0.40
codegen_flags: <defaults>
</compile_context>

<pallas_src>
import functools

import jax
import jax.numpy as jnp
from jax.experimental import pallas as pl
from jax.experimental.pallas import tpu as pltpu

# gelu_tanh(x) = 0.5*x*(1+tanh(sqrt(2/pi)*(x+0.044715 x^3)))
#              = x * sigmoid(2*sqrt(2/pi)*(x + 0.044715 x^3))
_TWO_SQRT_2_OVER_PI = 1.5957691216057308


def _round_up(x, m):
    return ((x + m - 1) // m) * m


def _device_kind():
    try:
        return jax.devices()[0].device_kind.lower()
    except Exception:
        return ""


def _vmem_capacity_bytes():
    try:
        cap = pltpu.get_tpu_info().vmem_capacity_bytes
        if cap:
            return int(cap)
    except Exception:
        pass
    # Fallback per device kind: 64 MiB on v7x, 128 MiB on v5e/v6e.
    kind = _device_kind()
    return (64 if "v7" in kind else 128) * 1024 * 1024


def _vmem_limit_bytes():
    # ~15% headroom below physical VMEM.
    return int(_vmem_capacity_bytes() * 0.85)


def _gelu_tanh(h, gelu_dtype):
    # h arrives as f32 (MXU accumulate + f32 bias). Epilogue runs in
    # `gelu_dtype` (bf16 on v6e/v7x, f32 on v5e).
    h = h.astype(gelu_dtype)
    return h * jax.nn.sigmoid(_TWO_SQRT_2_OVER_PI * (h + 0.044715 * (h * h * h)))


def _mlp_resident_kernel(x_ref, w1_ref, b1_ref, w2_ref, b2_ref, o_ref, *,
                         gelu_dtype):
    # x_ref: (tm, D) bf16; w1_ref: (D, I) bf16; b1_ref: (1, I) f32
    # w2_ref: (I, D) bf16; b2_ref: (1, D) f32; o_ref: (tm, D) out_dtype
    h = jnp.dot(x_ref[...], w1_ref[...], preferred_element_type=jnp.float32)
    h = h + b1_ref[...]                       # f32 bias add
    g = _gelu_tanh(h, gelu_dtype)
    out = jnp.dot(g.astype(w2_ref.dtype), w2_ref[...],
                  preferred_element_type=jnp.float32)
    o_ref[...] = (out + b2_ref[...]).astype(o_ref.dtype)


def _mlp_chunked_kernel(x_ref, w1_ref, b1_ref, w2_ref, b2_ref, o_ref, acc_ref,
                        *, gelu_dtype):
    # Fallback path streaming the intermediate dim in chunks of ti.
    j = pl.program_id(1)

    h = jnp.dot(x_ref[...], w1_ref[...], preferred_element_type=jnp.float32)
    h = h + b1_ref[...]
    g = _gelu_tanh(h, gelu_dtype)
    p = jnp.dot(g.astype(w2_ref.dtype), w2_ref[...],
                preferred_element_type=jnp.float32)

    @pl.when(j == 0)
    def _store_first():
        acc_ref[...] = p

    @pl.when(j > 0)
    def _accumulate():
        acc_ref[...] += p

    @pl.when(j == pl.num_programs(1) - 1)
    def _finish():
        o_ref[...] = (acc_ref[...] + b2_ref[...]).astype(o_ref.dtype)


def siglip_mlp(hidden_states, w1, b1, w2, b2, *, tm=None, ti=None,
               compute_dtype=jnp.bfloat16, gelu_dtype=None):
    """SiglipMLP forward: fc2(gelu_tanh(fc1(x))).

    hidden_states: [B, S, D]; w1: [D, I]; b1: [I]; w2: [I, D]; b2: [D]
    (nn.Linear weights pre-transposed to (in, out) so we compute x @ W).

    tm: row tile. None => auto (512 on 128 MiB chips, 256 on 64 MiB), then
        clamped so at least 2 row tiles exist (v7x megacore sharding).
    ti: intermediate-dim chunk. None (default, all chips) => weights resident
        for the whole grid. Only pass ti for intermediate sizes that genuinely
        don't fit VMEM; chunking re-streams weights once per row tile.
    """
    B, S, D = hidden_states.shape
    I = w1.shape[1]
    out_dtype = hidden_states.dtype
    M = B * S

    vmem_cap = _vmem_capacity_bytes()

    # Row tile selection.
    if tm is None:
        tm = 512 if vmem_cap >= 100 * 1024 * 1024 else 256
    if M <= 128:
        tm = _round_up(max(M, 8), 8)
    else:
        # Keep >= 2 row tiles so the "parallel" axis shards across both
        # TensorCores on v7x; no-op for large M.
        tm = min(tm, max(128, _round_up(-(-M // 2), 128)))
    assert tm % 8 == 0
    n_rows = pl.cdiv(M, tm)   # ragged last tile handled by Pallas; no jnp.pad

    # Intermediate-dim chunking (fallback only).
    if ti is None:
        ti = I
    assert I % ti == 0, "intermediate chunk must divide intermediate_size"
    # multiples of 256 preferred on v6e/v7x (2x256^2 MXU); 128 is the minimum.
    assert ti == I or ti % 128 == 0, "ti must be lane-aligned (multiple of 128)"
    n_i = I // ti

    # GELU epilogue dtype: bf16 on v6e/v7x (bf16 VPU/EUP), f32 on v5e.
    if gelu_dtype is None:
        kind = _device_kind()
        if "v5" in kind or jnp.dtype(compute_dtype) == jnp.dtype(jnp.float32):
            gelu_dtype = jnp.float32
        else:
            gelu_dtype = compute_dtype

    # bf16 operands into both MXU matmuls (f32 accumulation in-kernel).
    x2d = hidden_states.reshape(M, D).astype(compute_dtype)
    w1c = w1.astype(compute_dtype)
    w2c = w2.astype(compute_dtype)
    # Biases stay f32 end-to-end (tiny; avoids quantization + in-kernel casts).
    b1_2d = b1.reshape(1, I).astype(jnp.float32)
    b2_2d = b2.reshape(1, D).astype(jnp.float32)

    cost = pl.CostEstimate(
        flops=4 * M * D * I,
        transcendentals=M * I,
        bytes_accessed=(x2d.size * x2d.dtype.itemsize
                        + M * D * jnp.dtype(out_dtype).itemsize
                        + w1c.size * w1c.dtype.itemsize
                        + w2c.size * w2c.dtype.itemsize
                        + (b1_2d.size + b2_2d.size) * 4),
    )

    # Blocks whose index_map is constant over the whole grid gain nothing from
    # double buffering — single-buffer them to halve their VMEM footprint.
    def const_spec(shape, index_map):
        return pl.BlockSpec(shape, index_map, pipeline_mode=pl.Buffered(1))

    if n_i == 1:
        # Weight-resident path (default on all chips): no accumulator scratch,
        # output written directly.
        kernel = functools.partial(_mlp_resident_kernel, gelu_dtype=gelu_dtype)
        grid_spec = pltpu.PrefetchScalarGridSpec(
            num_scalar_prefetch=0,
            grid=(n_rows,),
            in_specs=[
                pl.BlockSpec((tm, D), lambda i: (i, 0)),     # x row tile
                const_spec((D, I), lambda i: (0, 0)),        # fc1 weight
                const_spec((1, I), lambda i: (0, 0)),        # fc1 bias (f32)
                const_spec((I, D), lambda i: (0, 0)),        # fc2 weight
                const_spec((1, D), lambda i: (0, 0)),        # fc2 bias (f32)
            ],
            out_specs=pl.BlockSpec((tm, D), lambda i: (i, 0)),
            scratch_shapes=[],
        )
        dim_sem = ("parallel",)
    else:
        # Chunked fallback: f32 accumulator over intermediate-dim chunks.
        kernel = functools.partial(_mlp_chunked_kernel, gelu_dtype=gelu_dtype)
        grid_spec = pltpu.PrefetchScalarGridSpec(
            num_scalar_prefetch=0,
            grid=(n_rows, n_i),                               # reduction axis last
            in_specs=[
                pl.BlockSpec((tm, D), lambda i, j: (i, 0)),   # x row tile
                pl.BlockSpec((D, ti), lambda i, j: (0, j)),   # fc1 weight chunk
                pl.BlockSpec((1, ti), lambda i, j: (0, j)),   # fc1 bias chunk
                pl.BlockSpec((ti, D), lambda i, j: (j, 0)),   # fc2 weight chunk
                const_spec((1, D), lambda i, j: (0, 0)),      # fc2 bias
            ],
            out_specs=pl.BlockSpec((tm, D), lambda i, j: (i, 0)),
            scratch_shapes=[pltpu.VMEM((tm, D), jnp.float32)],
        )
        dim_sem = ("parallel", "arbitrary")

    out2d = pl.pallas_call(
        kernel,
        out_shape=jax.ShapeDtypeStruct((M, D), out_dtype),
        grid_spec=grid_spec,
        compiler_params=pltpu.CompilerParams(
            dimension_semantics=dim_sem,
            vmem_limit_bytes=_vmem_limit_bytes(),
        ),
        cost_estimate=cost,
    )(x2d, w1c, b1_2d, w2c, b2_2d)

    return out2d.reshape(B, S, D)


def _reference_mlp(x, w1, b1, w2, b2):
    h = jnp.dot(x, w1) + b1
    g = jax.nn.gelu(h, approximate=True)   # tanh-approx gelu
    return jnp.dot(g, w2) + b2


if __name__ == "__main__":
    # Small shapes consistent with SiglipVisionConfig (lane-aligned hidden dims):
    # batch=2, seq=72 (ragged vs the row tile -> exercises partial last block),
    # embed_dim=256, intermediate_size=512.
    B, S, D, I = 2, 72, 256, 512

    key = jax.random.PRNGKey(0)
    kx, kw1, kb1, kw2, kb2 = jax.random.split(key, 5)

    x = jax.random.normal(kx, (B, S, D), dtype=jnp.float32)
    # nn.Linear stores weight as (out, in); pre-transposed here to (in, out).
    w1 = jax.random.normal(kw1, (D, I), dtype=jnp.float32) * 0.02
    b1 = jax.random.normal(kb1, (I,), dtype=jnp.float32) * 0.02
    w2 = jax.random.normal(kw2, (I, D), dtype=jnp.float32) * 0.02
    b2 = jax.random.normal(kb2, (D,), dtype=jnp.float32) * 0.02

    ref = _reference_mlp(x, w1, b1, w2, b2)

    # Weight-resident path (default on all chips).
    out_resident = jax.block_until_ready(siglip_mlp(x, w1, b1, w2, b2))
    # Chunked fallback path (only for configs whose weights don't fit VMEM).
    out_chunked = jax.block_until_ready(siglip_mlp(x, w1, b1, w2, b2, ti=I // 2))

    for out in (out_resident, out_chunked):
        assert out.shape == (B, S, D)
        # bf16 MXU operands / bf16 GELU epilogue vs f32 reference.
        assert jnp.allclose(out.astype(jnp.float32), ref, atol=3e-2, rtol=3e-2), \
            "mismatch vs reference"

    print("KERNEL_OK")
</pallas_src>

<mosaic_0001>
module attributes {stable_mosaic.version = 11 : i64} {
  func.func @_mlp_resident_kernel(%arg0: i32, %arg1: memref<128x256xbf16, #tpu.memory_space<vmem>>, %arg2: memref<256x512xbf16, #tpu.memory_space<vmem>>, %arg3: memref<1x512xf32, #tpu.memory_space<vmem>>, %arg4: memref<512x256xbf16, #tpu.memory_space<vmem>>, %arg5: memref<1x256xf32, #tpu.memory_space<vmem>>, %arg6: memref<128x256xf32, #tpu.memory_space<vmem>>) attributes {dimension_semantics = [#tpu.dimension_semantics<parallel>], iteration_bounds = array<i64: 2>, scalar_prefetch = 0 : i64, scratch_operands = 0 : i64, tpu.core_type = #tpu.core_type<tc>, window_params = [{transform_indices = @transform_0, window_bounds = array<i64: 128, 256>}, {pipeline_mode = #tpu.pipeline_mode<synchronous>, transform_indices = @transform_1, window_bounds = array<i64: 256, 512>}, {pipeline_mode = #tpu.pipeline_mode<synchronous>, transform_indices = @transform_2, window_bounds = array<i64: 1, 512>}, {pipeline_mode = #tpu.pipeline_mode<synchronous>, transform_indices = @transform_3, window_bounds = array<i64: 512, 256>}, {pipeline_mode = #tpu.pipeline_mode<synchronous>, transform_indices = @transform_4, window_bounds = array<i64: 1, 256>}, {transform_indices = @transform_5, window_bounds = array<i64: 128, 256>}]} {
    %c0 = arith.constant 0 : index
    %c0_0 = arith.constant 0 : index
    %0 = vector.load %arg1[%c0, %c0_0] : memref<128x256xbf16, #tpu.memory_space<vmem>>, vector<128x256xbf16>
    %c0_1 = arith.constant 0 : index
    %c0_2 = arith.constant 0 : index
    %1 = vector.load %arg2[%c0_1, %c0_2] : memref<256x512xbf16, #tpu.memory_space<vmem>>, vector<256x512xbf16>
    %cst = arith.constant dense<0.000000e+00> : vector<128x512xf32>
    %2 = tpu.matmul %0, %1, %cst {dimension_numbers = #tpu.dot_dimension_numbers<[1], [0], [0], [1], [0, 0, 1, 1], [], []>} : vector<128x256xbf16>, vector<256x512xbf16>, vector<128x512xf32> -> vector<128x512xf32>
    %c0_3 = arith.constant 0 : index
    %c0_4 = arith.constant 0 : index
    %3 = vector.load %arg3[%c0_3, %c0_4] : memref<1x512xf32, #tpu.memory_space<vmem>>, vector<1x512xf32>
    %4 = vector.broadcast %3 : vector<1x512xf32> to vector<128x512xf32>
    %5 = arith.addf %2, %4 : vector<128x512xf32>
    %6 = arith.truncf %5 : vector<128x512xf32> to vector<128x512xbf16>
    %7 = arith.mulf %6, %6 : vector<128x512xbf16>
    %8 = arith.mulf %7, %6 : vector<128x512xbf16>
    %cst_5 = arith.constant 4.467770e-02 : bf16
    %9 = vector.broadcast %cst_5 : bf16 to vector<128x512xbf16>
    %10 = arith.mulf %9, %8 : vector<128x512xbf16>
    %11 = arith.addf %6, %10 : vector<128x512xbf16>
    %cst_6 = arith.constant 1.593750e+00 : bf16
    %12 = vector.broadcast %cst_6 : bf16 to vector<128x512xbf16>
    %13 = arith.mulf %12, %11 : vector<128x512xbf16>
    %14 = arith.negf %13 : vector<128x512xbf16>
    %15 = math.exp %14 : vector<128x512xbf16>
    %cst_7 = arith.constant 1.000000e+00 : bf16
    %16 = vector.broadcast %cst_7 : bf16 to vector<128x512xbf16>
    %17 = arith.addf %16, %15 : vector<128x512xbf16>
    %18 = arith.divf %16, %17 : vector<128x512xbf16>
    %19 = arith.mulf %6, %18 : vector<128x512xbf16>
    %c0_8 = arith.constant 0 : index
    %c0_9 = arith.constant 0 : index
    %20 = vector.load %arg4[%c0_8, %c0_9] : memref<512x256xbf16, #tpu.memory_space<vmem>>, vector<512x256xbf16>
    %cst_10 = arith.constant dense<0.000000e+00> : vector<128x256xf32>
    %21 = tpu.matmul %19, %20, %cst_10 {dimension_numbers = #tpu.dot_dimension_numbers<[1], [0], [0], [1], [0, 0, 1, 1], [], []>} : vector<128x512xbf16>, vector<512x256xbf16>, vector<128x256xf32> -> vector<128x256xf32>
    %c0_11 = arith.constant 0 : index
    %c0_12 = arith.constant 0 : index
    %22 = vector.load %arg5[%c0_11, %c0_12] : memref<1x256xf32, #tpu.memory_space<vmem>>, vector<1x256xf32>
    %23 = vector.broadcast %22 : vector<1x256xf32> to vector<128x256xf32>
    %24 = arith.addf %21, %23 : vector<128x256xf32>
    %c0_13 = arith.constant 0 : index
    %c0_14 = arith.constant 0 : index
    %25 = vector.load %arg6[%c0_13, %c0_14] : memref<128x256xf32, #tpu.memory_space<vmem>>, vector<128x256xf32>
    tpu.vector_store %arg6[%c0_13, %c0_14], %24 {strides = array<i32>} : memref<128x256xf32, #tpu.memory_space<vmem>>, vector<128x256xf32>,
    return
  }
  func.func @transform_0(%arg0: i32) -> (i32, i32) {
    %c0_i32 = arith.constant 0 : i32
    %c0_i32_0 = arith.constant 0 : i32
    return %arg0, %c0_i32 : i32, i32
  }
  func.func @transform_1(%arg0: i32) -> (i32, i32) {
    %c0_i32 = arith.constant 0 : i32
    %c0_i32_0 = arith.constant 0 : i32
    %c0_i32_1 = arith.constant 0 : i32
    return %c0_i32, %c0_i32_0 : i32, i32
  }
  func.func @transform_2(%arg0: i32) -> (i32, i32) {
    %c0_i32 = arith.constant 0 : i32
    %c0_i32_0 = arith.constant 0 : i32
    %c0_i32_1 = arith.constant 0 : i32
    return %c0_i32, %c0_i32_0 : i32, i32
  }
  func.func @transform_3(%arg0: i32) -> (i32, i32) {
    %c0_i32 = arith.constant 0 : i32
    %c0_i32_0 = arith.constant 0 : i32
    %c0_i32_1 = arith.constant 0 : i32
    return %c0_i32, %c0_i32_0 : i32, i32
  }
  func.func @transform_4(%arg0: i32) -> (i32, i32) {
    %c0_i32 = arith.constant 0 : i32
    %c0_i32_0 = arith.constant 0 : i32
    %c0_i32_1 = arith.constant 0 : i32
    return %c0_i32, %c0_i32_0 : i32, i32
  }
  func.func @transform_5(%arg0: i32) -> (i32, i32) {
    %c0_i32 = arith.constant 0 : i32
    %c0_i32_0 = arith.constant 0 : i32
    return %arg0, %c0_i32 : i32, i32
  }
}

</mosaic_0001>

<llo_original>
// kernel: tpu_custom_call.1
$region0: #{tpu_custom_call.1}
  #allocation0 [shape = 'u32[]', space=smem, size = 0x4, offset = 0x4, fixed_abs, tag = 'smem constant byte address 0x4 - core index']
  #allocation1 [shape = 'u32[144,128]{1,0:T(1,128)}', space=vmem, size = 0x12000, scoped, tag = 'internal scratch']
  %s0 = inlined_call_operand.hbm [shape: bf16[144,256], index: 0, kind: input, shape index: {}]
  %s1 = inlined_call_operand.hbm [shape: bf16[256,512], index: 1, kind: input, shape index: {}]
  %s2 = inlined_call_operand.hbm [shape: f32[1,512], index: 2, kind: input, shape index: {}]
  %s3 = inlined_call_operand.hbm [shape: bf16[512,256], index: 3, kind: input, shape index: {}]
  %s4 = inlined_call_operand.hbm [shape: f32[1,256], index: 4, kind: input, shape index: {}]
  %s5 = inlined_call_operand.hbm [shape: f32[144,256], index: 5, kind: output, shape index: {}]
  %s6 = sld [smem:[#allocation0]]
  $region73: #{tpu_custom_call.1} parent=0
    _
  %s8 = ssub.s32 1, %s6
  %s9 = scalar_select 0, %s8, %s6
  $region1: #{tpu_custom_call.1} parent=0
    #allocation2 [shape = 'u8[131072]{0}', space=vmem, size = 0x20000, scoped, tag = 'input window, operand 0']
    #allocation3 [shape = 's32[2]{0}', space=sflag, size = 0x8, scoped, tag = 'scoped memory for tpu_custom_call.1']
    #allocation4 [shape = 's32[2]{0}', space=sflag, size = 0x8, scoped, tag = 'scoped memory for tpu_custom_call.1']
    #allocation5 [shape = 'u8[262144]{0}', space=vmem, size = 0x40000, scoped, tag = 'input window, operand 1, single buffered']
    #allocation6 [shape = 's32[1]{0}', space=sflag, size = 0x4, scoped, tag = 'scoped memory for tpu_custom_call.1']
    #allocation7 [shape = 'u8[2048]{0}', space=vmem, size = 0x800, scoped, tag = 'input window, operand 2, single buffered']
    #allocation8 [shape = 'u8[262144]{0}', space=vmem, size = 0x40000, scoped, tag = 'input window, operand 3, single buffered']
    #allocation9 [shape = 's32[1]{0}', space=sflag, size = 0x4, scoped, tag = 'scoped memory for tpu_custom_call.1']
    #allocation10 [shape = 'u8[1024]{0}', space=vmem, size = 0x400, scoped, tag = 'input window, operand 4, single buffered']
    #allocation11 [shape = 'u8[262144]{0}', space=vmem, size = 0x40000, scoped, tag = 'output window, operand 0']
    %10 = vsyncpa [#allocation3], 0
    %s11 = scalar_lea.sflag [#allocation3], 1
    %12 = vsyncpa %s11, 0
    %13 = vsyncpa [#allocation6], 0
    %14 = vsyncpa [#allocation9], 0
    %15 = vsyncpa [#allocation4], 0
    %s16 = scalar_lea.sflag [#allocation4], 1
    %17 = vsyncpa %s16, 0
    loop: start=0, step=1, limit=4
    $region2: #{tpu_custom_call.1} parent=1 // loop_pre_header
      _
    $region3: #{tpu_custom_call.1} parent=1 // loop_header
      %s19 = sphi 0, %s23
      %p20 = scmp.ge.s32.totalorder %s19, 4
      %s29 = sphi 0, %s31
      %s32 = sphi 0, %s29
      %s33 = sphi 0, %s32
      %s49 = sphi 0, %s33
      %s53 = sphi 0, %s53
      %s55 = sphi 0, %s53
      %s56 = sphi 0, %s55
      %s70 = sphi 0, %s56
      %s74 = sphi 0, %s74
      %s76 = sphi 0, %s74
      %s77 = sphi 0, %s76
      %s91 = sphi 0, %s77
      %s95 = sphi 0, %s95
      %s97 = sphi 0, %s95
      %s98 = sphi 0, %s97
      %s112 = sphi 0, %s98
      %s116 = sphi 0, %s116
      %s118 = sphi 0, %s116
      %s119 = sphi 0, %s118
      %s133 = sphi 0, %s119
      %s139 = sphi 0, %s141
      %s142 = sphi 0, %s139
      %s143 = sphi 0, %s142
      %s159 = sphi 0, %s143
    $region4: #{tpu_custom_call.1} parent=1 // loop_header_branch
      %22 = sbr.rel (%p20) target = $region8
    $region5: #{tpu_custom_call.1} parent=1 // loop_body
      %s24 = ssub.s32 %s19, 1
      %s25 = ssub.s32 %s19, 2
      %s26 = sadd.s32 %s19, 1
      %s27 = ssub.s32 %s19, %s26
      %p28 = scmp.eq.s32.totalorder %s27, 0
      %s30 = sadd.s32 %s29, 1
      %s31 = scalar_select %p28, %s29, %s30
      %p34 = pneg %p28
      %p35 = scmp.eq.s32.totalorder %s19, 1
      %p36 = por %p34, %p35
      %p37 = scmp.ne.s32.totalorder %s29, %s32
      %p38 = scmp.eq.s32.totalorder %s19, 0
      %p39 = por %p37, %p38
      %p40 = scmp.ne.s32.totalorder %s29, %s32
      %p41 = scmp.eq.s32.totalorder %s24, 1
      %p42 = por %p40, %p41
      %p43 = scmp.ne.s32.totalorder %s32, %s33
      %p44 = scmp.eq.s32.totalorder %s24, 0
      %p45 = por %p43, %p44
      %p46 = scmp.ne.s32.totalorder %s32, %s33
      %p47 = scmp.eq.s32.totalorder %s25, 1
      %p48 = por %p46, %p47
      %p50 = scmp.ne.s32.totalorder %s33, %s49
      %p51 = scmp.eq.s32.totalorder %s25, 0
      %p52 = por %p50, %p51
      %s54 = sadd.s32 %s53, 1
      %p57 = scmp.eq.s32.totalorder %s19, 1
      %p58 = scmp.ne.s32.totalorder %s53, %s55
      %p59 = scmp.eq.s32.totalorder %s19, 0
      %p60 = por %p58, %p59
      %p61 = scmp.ne.s32.totalorder %s53, %s55
      %p62 = scmp.eq.s32.totalorder %s24, 1
      %p63 = por %p61, %p62
      %p64 = scmp.ne.s32.totalorder %s55, %s56
      %p65 = scmp.eq.s32.totalorder %s24, 0
      %p66 = por %p64, %p65
      %p67 = scmp.ne.s32.totalorder %s55, %s56
      %p68 = scmp.eq.s32.totalorder %s25, 1
      %p69 = por %p67, %p68
      %p71 = scmp.ne.s32.totalorder %s56, %s70
      %p72 = scmp.eq.s32.totalorder %s25, 0
      %p73 = por %p71, %p72
      %s75 = sadd.s32 %s74, 1
      %p78 = scmp.eq.s32.totalorder %s19, 1
      %p79 = scmp.ne.s32.totalorder %s74, %s76
      %p80 = scmp.eq.s32.totalorder %s19, 0
      %p81 = por %p79, %p80
      %p82 = scmp.ne.s32.totalorder %s74, %s76
      %p83 = scmp.eq.s32.totalorder %s24, 1
      %p84 = por %p82, %p83
      %p85 = scmp.ne.s32.totalorder %s76, %s77
      %p86 = scmp.eq.s32.totalorder %s24, 0
      %p87 = por %p85, %p86
      %p88 = scmp.ne.s32.totalorder %s76, %s77
      %p89 = scmp.eq.s32.totalorder %s25, 1
      %p90 = por %p88, %p89
      %p92 = scmp.ne.s32.totalorder %s77, %s91
      %p93 = scmp.eq.s32.totalorder %s25, 0
      %p94 = por %p92, %p93
      %s96 = sadd.s32 %s95, 1
      %p99 = scmp.eq.s32.totalorder %s19, 1
      %p100 = scmp.ne.s32.totalorder %s95, %s97
      %p101 = scmp.eq.s32.totalorder %s19, 0
      %p102 = por %p100, %p101
      %p103 = scmp.ne.s32.totalorder %s95, %s97
      %p104 = scmp.eq.s32.totalorder %s24, 1
      %p105 = por %p103, %p104
      %p106 = scmp.ne.s32.totalorder %s97, %s98
      %p107 = scmp.eq.s32.totalorder %s24, 0
      %p108 = por %p106, %p107
      %p109 = scmp.ne.s32.totalorder %s97, %s98
      %p110 = scmp.eq.s32.totalorder %s25, 1
      %p111 = por %p109, %p110
      %p113 = scmp.ne.s32.totalorder %s98, %s112
      %p114 = scmp.eq.s32.totalorder %s25, 0
      %p115 = por %p113, %p114
      %s117 = sadd.s32 %s116, 1
      %p120 = scmp.eq.s32.totalorder %s19, 1
      %p121 = scmp.ne.s32.totalorder %s116, %s118
      %p122 = scmp.eq.s32.totalorder %s19, 0
      %p123 = por %p121, %p122
      %p124 = scmp.ne.s32.totalorder %s116, %s118
      %p125 = scmp.eq.s32.totalorder %s24, 1
      %p126 = por %p124, %p125
      %p127 = scmp.ne.s32.totalorder %s118, %s119
      %p128 = scmp.eq.s32.totalorder %s24, 0
      %p129 = por %p127, %p128
      %p130 = scmp.ne.s32.totalorder %s118, %s119
      %p131 = scmp.eq.s32.totalorder %s25, 1
      %p132 = por %p130, %p131
      %p134 = scmp.ne.s32.totalorder %s119, %s133
      %p135 = scmp.eq.s32.totalorder %s25, 0
      %p136 = por %p134, %p135
      %s137 = ssub.s32 %s19, %s26
      %p138 = scmp.eq.s32.totalorder %s137, 0
      %s140 = sadd.s32 %s139, 1
      %s141 = scalar_select %p138, %s139, %s140
      %p144 = pneg %p138
      %p145 = scmp.eq.s32.totalorder %s19, 1
      %p146 = por %p144, %p145
      %p147 = scmp.ne.s32.totalorder %s139, %s142
      %p148 = scmp.eq.s32.totalorder %s19, 0
      %p149 = por %p147, %p148
      %p150 = scmp.ne.s32.totalorder %s139, %s142
      %p151 = scmp.eq.s32.totalorder %s24, 1
      %p152 = por %p150, %p151
      %p153 = scmp.ne.s32.totalorder %s142, %s143
      %p154 = scmp.eq.s32.totalorder %s24, 0
      %p155 = por %p153, %p154
      %p156 = scmp.ne.s32.totalorder %s142, %s143
      %p157 = scmp.eq.s32.totalorder %s25, 1
      %p158 = por %p156, %p157
      %p160 = scmp.ne.s32.totalorder %s143, %s159
      %p161 = scmp.eq.s32.totalorder %s25, 0
      %p162 = por %p160, %p161
      %p163 = scmp.le.s32.totalorder 1, %s19
      %p164 = scmp.lt.s32.totalorder %s19, 3
      %p165 = pnand %p163, %p164
      %p166 = pneg %p165
      // Predicated region
      $region9: #{tpu_custom_call.1} parent=5 // pred_check
        _
      $region10: #{tpu_custom_call.1} parent=5 // pred_check_branch
        %168 = sbr.rel (%p165) target = $region12
      $region11: #{tpu_custom_call.1} parent=5 // pred_region
        %s169 = ssub.s32 %s19, 1
        // Predicated region
        $region13: #{tpu_custom_call.1} parent=11 // pred_check
          %p170 = pneg %p66
        $region14: #{tpu_custom_call.1} parent=11 // pred_check_branch
          %172 = sbr.rel (%p170) target = $region16
        $region15: #{tpu_custom_call.1} parent=11 // pred_region
          %s174 = ssub.s32 8192, 8192
          %175 = vsyncadd [#allocation6], %s174
          %s176 = sshll.u32 [#allocation5], 4
          %s177 = int_to_ptr.vmem [resolvable:$true] %s176
          %182 = dma.hbm_to_vmem [thread:$0]  %s1, 8192, %s177, [#allocation6], 256, 256, 16
        $region16: #{tpu_custom_call.1} parent=11 // pred_fallthru
          _
        // Predicated region
        $region17: #{tpu_custom_call.1} parent=11 // pred_check
          %p183 = pneg %p87
        $region18: #{tpu_custom_call.1} parent=11 // pred_check_branch
          %185 = sbr.rel (%p183) target = $region20
        $region19: #{tpu_custom_call.1} parent=11 // pred_region
          %s187 = ssub.s32 64, 64
          %188 = vsyncadd [#allocation6], %s187
          %s190 = sshll.u32 [#allocation7], 4
          %s191 = int_to_ptr.vmem [resolvable:$true] %s190
          %193 = dma.hbm_to_vmem [thread:$0]  %s2, 64, %s191, [#allocation6]
        $region20: #{tpu_custom_call.1} parent=11 // pred_fallthru
          _
        // Predicated region
        $region21: #{tpu_custom_call.1} parent=11 // pred_check
          %p194 = pneg %p108
        $region22: #{tpu_custom_call.1} parent=11 // pred_check_branch
          %196 = sbr.rel (%p194) target = $region24
        $region23: #{tpu_custom_call.1} parent=11 // pred_region
          %s198 = ssub.s32 8192, 8192
          %199 = vsyncadd [#allocation9], %s198
          %s200 = sshll.u32 [#allocation8], 4
          %s201 = int_to_ptr.vmem [resolvable:$true] %s200
          %206 = dma.hbm_to_vmem [thread:$0]  %s3, 8192, %s201, [#allocation9], 128, 128, 8
        $region24: #{tpu_custom_call.1} parent=11 // pred_fallthru
          _
        // Predicated region
        $region25: #{tpu_custom_call.1} parent=11 // pred_check
          %p207 = pneg %p129
        $region26: #{tpu_custom_call.1} parent=11 // pred_check_branch
          %209 = sbr.rel (%p207) target = $region28
        $region27: #{tpu_custom_call.1} parent=11 // pred_region
          %s211 = ssub.s32 32, 32
          %212 = vsyncadd [#allocation9], %s211
          %s214 = sshll.u32 [#allocation10], 4
          %s215 = int_to_ptr.vmem [resolvable:$true] %s214
          %217 = dma.hbm_to_vmem [thread:$0]  %s4, 32, %s215, [#allocation9]
        $region28: #{tpu_custom_call.1} parent=11 // pred_fallthru
          _
      $region12: #{tpu_custom_call.1} parent=5 // pred_fallthru
        _
      %p218 = scmp.lt.s32.totalorder %s19, 2
      // Predicated region
      $region29: #{tpu_custom_call.1} parent=5 // pred_check
        %p219 = pneg %p218
      $region30: #{tpu_custom_call.1} parent=5 // pred_check_branch
        %221 = sbr.rel (%p219) target = $region32
      $region31: #{tpu_custom_call.1} parent=5 // pred_region
        // Predicated region
        $region33: #{tpu_custom_call.1} parent=31 // pred_check
          %p222 = pneg %p39
        $region34: #{tpu_custom_call.1} parent=31 // pred_check_branch
          %224 = sbr.rel (%p222) target = $region36
        $region35: #{tpu_custom_call.1} parent=31 // pred_region
          %s225 = sand.u32 %s29, 1
          %s226 = scalar_lea.sflag [#allocation3], %s225
          %s227 = sand.u32 %s29, 1
          %s228 = smul.addr %s227, 128
          %s229 = scalar_lea.vmem [#allocation2], %s228
          %s230 = smul.u32 16, %s19
          %s231 = ssub.s32 18, %s230
          %p232 = scmp.lt.s32.totalorder %s231, 16
          %s233 = scalar_select %p232, %s231, 16
          %s234 = smul.u32 64, %s233
          %s235 = smul.u32 %s234, 2
          %s237 = ssub.s32 2048, %s235
          %238 = vsyncadd %s226, %s237
          %p239 = scmp.ne.s32.totalorder 0, %s235
          %s240 = smul.addr %s230, 2
          %s241 = smul.addr %s240, 64
          %s242 = scalar_lea.hbm %s0, %s241
          %s243 = smul.u32 8, %s233
          %s244 = sshll.u32 %s229, 4
          %s245 = int_to_ptr.vmem [resolvable:$true] %s244
          %s246 = sshll.u32 %s243, 4
          %250 = dma.hbm_to_vmem [thread:$0]  (%p239), %s242, %s246, %s245, %s226, 128, 128, 8
        $region36: #{tpu_custom_call.1} parent=31 // pred_fallthru
          _
      $region32: #{tpu_custom_call.1} parent=5 // pred_fallthru
        _
      %p251 = scmp.le.s32.totalorder 1, %s19
      %p252 = scmp.lt.s32.totalorder %s19, 3
      %p253 = pnand %p251, %p252
      %p254 = pneg %p253
      // Predicated region
      $region37: #{tpu_custom_call.1} parent=5 // pred_check
        _
      $region38: #{tpu_custom_call.1} parent=5 // pred_check_branch
        %256 = sbr.rel (%p253) target = $region40
      $region39: #{tpu_custom_call.1} parent=5 // pred_region
        %s257 = ssub.s32 %s19, 1
        %s258 = sand.u32 %s32, 1
        %s259 = scalar_lea.sflag [#allocation3], %s258
        %s260 = sand.u32 %s32, 1
        %s261 = smul.addr %s260, 128
        %s262 = scalar_lea.vmem [#allocation2], %s261
        // Predicated region
        $region41: #{tpu_custom_call.1} parent=39 // pred_check
          %p263 = pneg %p45
        $region42: #{tpu_custom_call.1} parent=39 // pred_check_branch
          %265 = sbr.rel (%p263) target = $region44
        $region43: #{tpu_custom_call.1} parent=39 // pred_region
          %266 = dma.done %s259, 2048
        $region44: #{tpu_custom_call.1} parent=39 // pred_fallthru
          _
        // Predicated region
        $region45: #{tpu_custom_call.1} parent=39 // pred_check
          %p267 = pneg %p66
        $region46: #{tpu_custom_call.1} parent=39 // pred_check_branch
          %269 = sbr.rel (%p267) target = $region48
        $region47: #{tpu_custom_call.1} parent=39 // pred_region
          %270 = dma.done [#allocation6], 8192
        $region48: #{tpu_custom_call.1} parent=39 // pred_fallthru
          _
        // Predicated region
        $region49: #{tpu_custom_call.1} parent=39 // pred_check
          %p271 = pneg %p87
        $region50: #{tpu_custom_call.1} parent=39 // pred_check_branch
          %273 = sbr.rel (%p271) target = $region52
        $region51: #{tpu_custom_call.1} parent=39 // pred_region
          %274 = dma.done [#allocation6], 64
        $region52: #{tpu_custom_call.1} parent=39 // pred_fallthru
          _
        // Predicated region
        $region53: #{tpu_custom_call.1} parent=39 // pred_check
          %p275 = pneg %p108
        $region54: #{tpu_custom_call.1} parent=39 // pred_check_branch
          %277 = sbr.rel (%p275) target = $region56
        $region55: #{tpu_custom_call.1} parent=39 // pred_region
          %278 = dma.done [#allocation9], 8192
        $region56: #{tpu_custom_call.1} parent=39 // pred_fallthru
          _
        // Predicated region
        $region57: #{tpu_custom_call.1} parent=39 // pred_check
          %p279 = pneg %p129
        $region58: #{tpu_custom_call.1} parent=39 // pred_check_branch
          %281 = sbr.rel (%p279) target = $region60
        $region59: #{tpu_custom_call.1} parent=39 // pred_region
          %282 = dma.done [#allocation9], 32
        $region60: #{tpu_custom_call.1} parent=39 // pred_fallthru
          _
        %s283 = sand.u32 %s32, 1
        %s284 = scalar_lea.sflag [#allocation3], %s283
        %s285 = sand.u32 %s32, 1
        %s286 = smul.addr %s285, 128
        %s287 = scalar_lea.vmem [#allocation2], %s286
        %p288 = pneg %p45
        %p289 = pneg %p42
        %p290 = pneg %p66
        %p291 = pneg %p63
        %p292 = pneg %p87
        %p293 = pneg %p84
        %p294 = pneg %p108
        %p295 = pneg %p105
        %p296 = pneg %p129
        %p297 = pneg %p126
        %p298 = pneg %p155
        %p299 = pneg %p152
        %s300 = sand.u32 %s142, 1
        %s301 = scalar_lea.sflag [#allocation4], %s300
        %s302 = sand.u32 %s142, 1
        %s303 = smul.addr %s302, 256
        %s304 = scalar_lea.vmem [#allocation11], %s303
        %s305 = smul.u32 16, %s24
        %s306 = ssub.s32 18, %s305
        %p307 = scmp.lt.s32.totalorder %s306, 16
        %s308 = scalar_select %p307, %s306, 16
        %s309 = smul.u32 64, %s308
        %s310 = smul.u32 %s309, 2
        %s311 = smul.u32 16, %s24
        %s312 = ssub.s32 18, %s311
        %p313 = scmp.lt.s32.totalorder %s312, 16
        %s314 = scalar_select %p313, %s312, 16
        %s315 = smul.u32 128, %s314
        %s316 = smul.u32 %s315, 2
        %v320 = vld [vmem:[%s262] sm:$0xff]
        %v321 = vld [vmem:[%s262 + $0x8] sm:$0xff]
        %v322 = vld [vmem:[%s262 + $0x10] sm:$0xff]
        %v323 = vld [vmem:[%s262 + $0x18] sm:$0xff]
        %v324 = vld [vmem:[%s262 + $0x20] sm:$0xff]
        %v325 = vld [vmem:[%s262 + $0x28] sm:$0xff]
        %v326 = vld [vmem:[%s262 + $0x30] sm:$0xff]
        %v327 = vld [vmem:[%s262 + $0x38] sm:$0xff]
        %v328 = vld [vmem:[%s262 + $0x40] sm:$0xff]
        %v329 = vld [vmem:[%s262 + $0x48] sm:$0xff]
        %v330 = vld [vmem:[%s262 + $0x50] sm:$0xff]
        %v331 = vld [vmem:[%s262 + $0x58] sm:$0xff]
        %v332 = vld [vmem:[%s262 + $0x60] sm:$0xff]
        %v333 = vld [vmem:[%s262 + $0x68] sm:$0xff]
        %v334 = vld [vmem:[%s262 + $0x70] sm:$0xff]
        %v335 = vld [vmem:[%s262 + $0x78] sm:$0xff]
        %v336 = vld [vmem:[#allocation5] sm:$0xff]
        %v337 = vld [vmem:[#allocation5 + $0x8] sm:$0xff]
        %v338 = vld [vmem:[#allocation5 + $0x10] sm:$0xff]
        %v339 = vld [vmem:[#allocation5 + $0x18] sm:$0xff]
        %v340 = vld [vmem:[#allocation5 + $0x20] sm:$0xff]
        %v341 = vld [vmem:[#allocation5 + $0x28] sm:$0xff]
        %v342 = vld [vmem:[#allocation5 + $0x30] sm:$0xff]
        %v343 = vld [vmem:[#allocation5 + $0x38] sm:$0xff]
        %v344 = vld [vmem:[#allocation5 + $0x40] sm:$0xff]
        %v345 = vld [vmem:[#allocation5 + $0x48] sm:$0xff]
        %v346 = vld [vmem:[#allocation5 + $0x50] sm:$0xff]
        %v347 = vld [vmem:[#allocation5 + $0x58] sm:$0xff]
        %v348 = vld [vmem:[#allocation5 + $0x60] sm:$0xff]
        %v349 = vld [vmem:[#allocation5 + $0x68] sm:$0xff]
        %v350 = vld [vmem:[#allocation5 + $0x70] sm:$0xff]
        %v351 = vld [vmem:[#allocation5 + $0x78] sm:$0xff]
        %v352 = vld [vmem:[#allocation5 + $0x80] sm:$0xff]
        %v353 = vld [vmem:[#allocation5 + $0x88] sm:$0xff]
        %v354 = vld [vmem:[#allocation5 + $0x90] sm:$0xff]
        %v355 = vld [vmem:[#allocation5 + $0x98] sm:$0xff]
        %v356 = vld [vmem:[#allocation5 + $0xa0] sm:$0xff]
        %v357 = vld [vmem:[#allocation5 + $0xa8] sm:$0xff]
        %v358 = vld [vmem:[#allocation5 + $0xb0] sm:$0xff]
        %v359 = vld [vmem:[#allocation5 + $0xb8] sm:$0xff]
        %v360 = vld [vmem:[#allocation5 + $0xc0] sm:$0xff]
        %v361 = vld [vmem:[#allocation5 + $0xc8] sm:$0xff]
        %v362 = vld [vmem:[#allocation5 + $0xd0] sm:$0xff]
        %v363 = vld [vmem:[#allocation5 + $0xd8] sm:$0xff]
        %v364 = vld [vmem:[#allocation5 + $0xe0] sm:$0xff]
        %v365 = vld [vmem:[#allocation5 + $0xe8] sm:$0xff]
        %v366 = vld [vmem:[#allocation5 + $0xf0] sm:$0xff]
        %v367 = vld [vmem:[#allocation5 + $0xf8] sm:$0xff]
        %v368 = vld [vmem:[#allocation5 + $0x100] sm:$0xff]
        %v369 = vld [vmem:[#allocation5 + $0x108] sm:$0xff]
        %v370 = vld [vmem:[#allocation5 + $0x110] sm:$0xff]
        %v371 = vld [vmem:[#allocation5 + $0x118] sm:$0xff]
        %v372 = vld [vmem:[#allocation5 + $0x120] sm:$0xff]
        %v373 = vld [vmem:[#allocation5 + $0x128] sm:$0xff]
        %v374 = vld [vmem:[#allocation5 + $0x130] sm:$0xff]
        %v375 = vld [vmem:[#allocation5 + $0x138] sm:$0xff]
        %v376 = vld [vmem:[#allocation5 + $0x140] sm:$0xff]
        %v377 = vld [vmem:[#allocation5 + $0x148] sm:$0xff]
        %v378 = vld [vmem:[#allocation5 + $0x150] sm:$0xff]
        %v379 = vld [vmem:[#allocation5 + $0x158] sm:$0xff]
        %v380 = vld [vmem:[#allocation5 + $0x160] sm:$0xff]
        %v381 = vld [vmem:[#allocation5 + $0x168] sm:$0xff]
        %v382 = vld [vmem:[#allocation5 + $0x170] sm:$0xff]
        %v383 = vld [vmem:[#allocation5 + $0x178] sm:$0xff]
        %v384 = vld [vmem:[#allocation5 + $0x180] sm:$0xff]
        %v385 = vld [vmem:[#allocation5 + $0x188] sm:$0xff]
        %v386 = vld [vmem:[#allocation5 + $0x190] sm:$0xff]
        %v387 = vld [vmem:[#allocation5 + $0x198] sm:$0xff]
        %v388 = vld [vmem:[#allocation5 + $0x1a0] sm:$0xff]
        %v389 = vld [vmem:[#allocation5 + $0x1a8] sm:$0xff]
        %v390 = vld [vmem:[#allocation5 + $0x1b0] sm:$0xff]
        %v391 = vld [vmem:[#allocation5 + $0x1b8] sm:$0xff]
        %v392 = vld [vmem:[#allocation5 + $0x1c0] sm:$0xff]
        %v393 = vld [vmem:[#allocation5 + $0x1c8] sm:$0xff]
        %v394 = vld [vmem:[#allocation5 + $0x1d0] sm:$0xff]
        %v395 = vld [vmem:[#allocation5 + $0x1d8] sm:$0xff]
        %v396 = vld [vmem:[#allocation5 + $0x1e0] sm:$0xff]
        %v397 = vld [vmem:[#allocation5 + $0x1e8] sm:$0xff]
        %v398 = vld [vmem:[#allocation5 + $0x1f0] sm:$0xff]
        %v399 = vld [vmem:[#allocation5 + $0x1f8] sm:$0xff]
        %v400 = vld [vmem:[#allocation7] sm:$0xf]
        %v402 = vlaneseq
        %v403 = vshrl.u32 %v402, 7
        %v404 = vsub.s32 0, %v403
        %v405 = vrot.slane %v400, %v404
        %v406 = vlaneseq
        %v407 = vshrl.u32 %v406, 7
        %v408 = vsub.s32 1, %v407
        %v409 = vrot.slane %v400, %v408
        %v410 = vlaneseq
        %v411 = vshrl.u32 %v410, 7
        %v412 = vsub.s32 2, %v411
        %v413 = vrot.slane %v400, %v412
        %v414 = vlaneseq
        %v415 = vshrl.u32 %v414, 7
        %v416 = vsub.s32 3, %v415
        %v417 = vrot.slane %v400, %v416
        %v438 = vunpack.c.l.b16 %v320
        %v439 = vunpack.c.h.b16 %v320
        %v440 = vunpack.c.l.b16 %v321
        %v441 = vunpack.c.h.b16 %v321
        %v442 = vunpack.c.l.b16 %v322
        %v443 = vunpack.c.h.b16 %v322
        %v444 = vunpack.c.l.b16 %v323
        %v445 = vunpack.c.h.b16 %v323
        %v446 = vunpack.c.l.b16 %v324
        %v447 = vunpack.c.h.b16 %v324
        %v448 = vunpack.c.l.b16 %v325
        %v449 = vunpack.c.h.b16 %v325
        %v450 = vunpack.c.l.b16 %v326
        %v451 = vunpack.c.h.b16 %v326
        %v452 = vunpack.c.l.b16 %v327
        %v453 = vunpack.c.h.b16 %v327
        %v454 = vunpack.c.l.b16 %v328
        %v455 = vunpack.c.h.b16 %v328
        %v456 = vunpack.c.l.b16 %v329
        %v457 = vunpack.c.h.b16 %v329
        %v458 = vunpack.c.l.b16 %v330
        %v459 = vunpack.c.h.b16 %v330
        %v460 = vunpack.c.l.b16 %v331
        %v461 = vunpack.c.h.b16 %v331
        %v462 = vunpack.c.l.b16 %v332
        %v463 = vunpack.c.h.b16 %v332
        %v464 = vunpack.c.l.b16 %v333
        %v465 = vunpack.c.h.b16 %v333
        %v466 = vunpack.c.l.b16 %v334
        %v467 = vunpack.c.h.b16 %v334
        %v468 = vunpack.c.l.b16 %v335
        %v469 = vunpack.c.h.b16 %v335
        %v470 = vpack.c.b16 %v440, %v438
        %v471 = vpack.c.b16 %v441, %v439
        %v472 = vpack.c.b16 %v444, %v442
        %v473 = vpack.c.b16 %v445, %v443
        %v474 = vpack.c.b16 %v448, %v446
        %v475 = vpack.c.b16 %v449, %v447
        %v476 = vpack.c.b16 %v452, %v450
        %v477 = vpack.c.b16 %v453, %v451
        %v478 = vpack.c.b16 %v456, %v454
        %v479 = vpack.c.b16 %v457, %v455
        %v480 = vpack.c.b16 %v460, %v458
        %v481 = vpack.c.b16 %v461, %v459
        %v482 = vpack.c.b16 %v464, %v462
        %v483 = vpack.c.b16 %v465, %v463
        %v484 = vpack.c.b16 %v468, %v466
        %v485 = vpack.c.b16 %v469, %v467
        %v566 = vunpack.c.l.b16 %v336
        %v567 = vunpack.c.h.b16 %v336
        %v568 = vunpack.c.l.b16 %v337
        %v569 = vunpack.c.h.b16 %v337
        %v570 = vunpack.c.l.b16 %v338
        %v571 = vunpack.c.h.b16 %v338
        %v572 = vunpack.c.l.b16 %v339
        %v573 = vunpack.c.h.b16 %v339
        %v574 = vunpack.c.l.b16 %v340
        %v575 = vunpack.c.h.b16 %v340
        %v576 = vunpack.c.l.b16 %v341
        %v577 = vunpack.c.h.b16 %v341
        %v578 = vunpack.c.l.b16 %v342
        %v579 = vunpack.c.h.b16 %v342
        %v580 = vunpack.c.l.b16 %v343
        %v581 = vunpack.c.h.b16 %v343
        %v582 = vunpack.c.l.b16 %v344
        %v583 = vunpack.c.h.b16 %v344
        %v584 = vunpack.c.l.b16 %v345
        %v585 = vunpack.c.h.b16 %v345
        %v586 = vunpack.c.l.b16 %v346
        %v587 = vunpack.c.h.b16 %v346
        %v588 = vunpack.c.l.b16 %v347
        %v589 = vunpack.c.h.b16 %v347
        %v590 = vunpack.c.l.b16 %v348
        %v591 = vunpack.c.h.b16 %v348
        %v592 = vunpack.c.l.b16 %v349
        %v593 = vunpack.c.h.b16 %v349
        %v594 = vunpack.c.l.b16 %v350
        %v595 = vunpack.c.h.b16 %v350
        %v596 = vunpack.c.l.b16 %v351
        %v597 = vunpack.c.h.b16 %v351
        %v598 = vunpack.c.l.b16 %v352
        %v599 = vunpack.c.h.b16 %v352
        %v600 = vunpack.c.l.b16 %v353
        %v601 = vunpack.c.h.b16 %v353
        %v602 = vunpack.c.l.b16 %v354
        %v603 = vunpack.c.h.b16 %v354
        %v604 = vunpack.c.l.b16 %v355
        %v605 = vunpack.c.h.b16 %v355
        %v606 = vunpack.c.l.b16 %v356
        %v607 = vunpack.c.h.b16 %v356
        %v608 = vunpack.c.l.b16 %v357
        %v609 = vunpack.c.h.b16 %v357
        %v610 = vunpack.c.l.b16 %v358
        %v611 = vunpack.c.h.b16 %v358
        %v612 = vunpack.c.l.b16 %v359
        %v613 = vunpack.c.h.b16 %v359
        %v614 = vunpack.c.l.b16 %v360
        %v615 = vunpack.c.h.b16 %v360
        %v616 = vunpack.c.l.b16 %v361
        %v617 = vunpack.c.h.b16 %v361
        %v618 = vunpack.c.l.b16 %v362
        %v619 = vunpack.c.h.b16 %v362
        %v620 = vunpack.c.l.b16 %v363
        %v621 = vunpack.c.h.b16 %v363
        %v622 = vunpack.c.l.b16 %v364
        %v623 = vunpack.c.h.b16 %v364
        %v624 = vunpack.c.l.b16 %v365
        %v625 = vunpack.c.h.b16 %v365
        %v626 = vunpack.c.l.b16 %v366
        %v627 = vunpack.c.h.b16 %v366
        %v628 = vunpack.c.l.b16 %v367
        %v629 = vunpack.c.h.b16 %v367
        %v630 = vunpack.c.l.b16 %v368
        %v631 = vunpack.c.h.b16 %v368
        %v632 = vunpack.c.l.b16 %v369
        %v633 = vunpack.c.h.b16 %v369
        %v634 = vunpack.c.l.b16 %v370
        %v635 = vunpack.c.h.b16 %v370
        %v636 = vunpack.c.l.b16 %v371
        %v637 = vunpack.c.h.b16 %v371
        %v638 = vunpack.c.l.b16 %v372
        %v639 = vunpack.c.h.b16 %v372
        %v640 = vunpack.c.l.b16 %v373
        %v641 = vunpack.c.h.b16 %v373
        %v642 = vunpack.c.l.b16 %v374
        %v643 = vunpack.c.h.b16 %v374
        %v644 = vunpack.c.l.b16 %v375
        %v645 = vunpack.c.h.b16 %v375
        %v646 = vunpack.c.l.b16 %v376
        %v647 = vunpack.c.h.b16 %v376
        %v648 = vunpack.c.l.b16 %v377
        %v649 = vunpack.c.h.b16 %v377
        %v650 = vunpack.c.l.b16 %v378
        %v651 = vunpack.c.h.b16 %v378
        %v652 = vunpack.c.l.b16 %v379
        %v653 = vunpack.c.h.b16 %v379
        %v654 = vunpack.c.l.b16 %v380
        %v655 = vunpack.c.h.b16 %v380
        %v656 = vunpack.c.l.b16 %v381
        %v657 = vunpack.c.h.b16 %v381
        %v658 = vunpack.c.l.b16 %v382
        %v659 = vunpack.c.h.b16 %v382
        %v660 = vunpack.c.l.b16 %v383
        %v661 = vunpack.c.h.b16 %v383
        %v662 = vunpack.c.l.b16 %v384
        %v663 = vunpack.c.h.b16 %v384
        %v664 = vunpack.c.l.b16 %v385
        %v665 = vunpack.c.h.b16 %v385
        %v666 = vunpack.c.l.b16 %v386
        %v667 = vunpack.c.h.b16 %v386
        %v668 = vunpack.c.l.b16 %v387
        %v669 = vunpack.c.h.b16 %v387
        %v670 = vunpack.c.l.b16 %v388
        %v671 = vunpack.c.h.b16 %v388
        %v672 = vunpack.c.l.b16 %v389
        %v673 = vunpack.c.h.b16 %v389
        %v674 = vunpack.c.l.b16 %v390
        %v675 = vunpack.c.h.b16 %v390
        %v676 = vunpack.c.l.b16 %v391
        %v677 = vunpack.c.h.b16 %v391
        %v678 = vunpack.c.l.b16 %v392
        %v679 = vunpack.c.h.b16 %v392
        %v680 = vunpack.c.l.b16 %v393
        %v681 = vunpack.c.h.b16 %v393
        %v682 = vunpack.c.l.b16 %v394
        %v683 = vunpack.c.h.b16 %v394
        %v684 = vunpack.c.l.b16 %v395
        %v685 = vunpack.c.h.b16 %v395
        %v686 = vunpack.c.l.b16 %v396
        %v687 = vunpack.c.h.b16 %v396
        %v688 = vunpack.c.l.b16 %v397
        %v689 = vunpack.c.h.b16 %v397
        %v690 = vunpack.c.l.b16 %v398
        %v691 = vunpack.c.h.b16 %v398
        %v692 = vunpack.c.l.b16 %v399
        %v693 = vunpack.c.h.b16 %v399
        %v694 = vpack.c.b16 %v570, %v566
        %v695 = vpack.c.b16 %v571, %v567
        %v696 = vpack.c.b16 %v572, %v568
        %v697 = vpack.c.b16 %v573, %v569
        %v698 = vpack.c.b16 %v578, %v574
        %v699 = vpack.c.b16 %v579, %v575
        %v700 = vpack.c.b16 %v580, %v576
        %v701 = vpack.c.b16 %v581, %v577
        %v702 = vpack.c.b16 %v586, %v582
        %v703 = vpack.c.b16 %v587, %v583
        %v704 = vpack.c.b16 %v588, %v584
        %v705 = vpack.c.b16 %v589, %v585
        %v706 = vpack.c.b16 %v594, %v590
        %v707 = vpack.c.b16 %v595, %v591
        %v708 = vpack.c.b16 %v596, %v592
        %v709 = vpack.c.b16 %v597, %v593
        %v710 = vpack.c.b16 %v602, %v598
        %v711 = vpack.c.b16 %v603, %v599
        %v712 = vpack.c.b16 %v604, %v600
        %v713 = vpack.c.b16 %v605, %v601
        %v714 = vpack.c.b16 %v610, %v606
        %v715 = vpack.c.b16 %v611, %v607
        %v716 = vpack.c.b16 %v612, %v608
        %v717 = vpack.c.b16 %v613, %v609
        %v718 = vpack.c.b16 %v618, %v614
        %v719 = vpack.c.b16 %v619, %v615
        %v720 = vpack.c.b16 %v620, %v616
        %v721 = vpack.c.b16 %v621, %v617
        %v722 = vpack.c.b16 %v626, %v622
        %v723 = vpack.c.b16 %v627, %v623
        %v724 = vpack.c.b16 %v628, %v624
        %v725 = vpack.c.b16 %v629, %v625
        %v726 = vpack.c.b16 %v634, %v630
        %v727 = vpack.c.b16 %v635, %v631
        %v728 = vpack.c.b16 %v636, %v632
        %v729 = vpack.c.b16 %v637, %v633
        %v730 = vpack.c.b16 %v642, %v638
        %v731 = vpack.c.b16 %v643, %v639
        %v732 = vpack.c.b16 %v644, %v640
        %v733 = vpack.c.b16 %v645, %v641
        %v734 = vpack.c.b16 %v650, %v646
        %v735 = vpack.c.b16 %v651, %v647
        %v736 = vpack.c.b16 %v652, %v648
        %v737 = vpack.c.b16 %v653, %v649
        %v738 = vpack.c.b16 %v658, %v654
        %v739 = vpack.c.b16 %v659, %v655
        %v740 = vpack.c.b16 %v660, %v656
        %v741 = vpack.c.b16 %v661, %v657
        %v742 = vpack.c.b16 %v666, %v662
        %v743 = vpack.c.b16 %v667, %v663
        %v744 = vpack.c.b16 %v668, %v664
        %v745 = vpack.c.b16 %v669, %v665
        %v746 = vpack.c.b16 %v674, %v670
        %v747 = vpack.c.b16 %v675, %v671
        %v748 = vpack.c.b16 %v676, %v672
        %v749 = vpack.c.b16 %v677, %v673
        %v750 = vpack.c.b16 %v682, %v678
        %v751 = vpack.c.b16 %v683, %v679
        %v752 = vpack.c.b16 %v684, %v680
        %v753 = vpack.c.b16 %v685, %v681
        %v754 = vpack.c.b16 %v690, %v686
        %v755 = vpack.c.b16 %v691, %v687
        %v756 = vpack.c.b16 %v692, %v688
        %v757 = vpack.c.b16 %v693, %v689
        %822 = vmatprep.subr.bf16.mxu0 %v695
        %823 = vmatpush1.bf16.msra.mxu0 %v694
        %824 = vmatprep.subr.bf16.mxu0 %v699
        %825 = vmatpush1.bf16.msra.mxu0 %v698
        %826 = vmatprep.subr.bf16.mxu0 %v703
        %827 = vmatpush1.bf16.msra.mxu0 %v702
        %828 = vmatprep.subr.bf16.mxu0 %v707
        %829 = vmatpush1.bf16.msra.mxu0 %v706
        %830 = vmatprep.subr.bf16.mxu0 %v711
        %831 = vmatpush1.bf16.msra.mxu0 %v710
        %832 = vmatprep.subr.bf16.mxu0 %v715
        %833 = vmatpush1.bf16.msra.mxu0 %v714
        %834 = vmatprep.subr.bf16.mxu0 %v719
        %835 = vmatpush1.bf16.msra.mxu0 %v718
        %836 = vmatprep.subr.bf16.mxu0 %v723
        %837 = vmatpush1.bf16.msra.mxu0 %v722
        %838 = vmatprep.subr.bf16.mxu0 %v727
        %839 = vmatpush1.bf16.msra.mxu0 %v726
        %840 = vmatprep.subr.bf16.mxu0 %v731
        %841 = vmatpush1.bf16.msra.mxu0 %v730
        %842 = vmatprep.subr.bf16.mxu0 %v735
        %843 = vmatpush1.bf16.msra.mxu0 %v734
        %844 = vmatprep.subr.bf16.mxu0 %v739
        %845 = vmatpush1.bf16.msra.mxu0 %v738
        %846 = vmatprep.subr.bf16.mxu0 %v743
        %847 = vmatpush1.bf16.msra.mxu0 %v742
        %848 = vmatprep.subr.bf16.mxu0 %v747
        %849 = vmatpush1.bf16.msra.mxu0 %v746
        %850 = vmatprep.subr.bf16.mxu0 %v751
        %851 = vmatpush1.bf16.msra.mxu0 %v750
        %852 = vmatprep.subr.bf16.mxu0 %v755
        %853 = vmatpush1.bf16.msra.mxu0 %v754
        %854 = vmatprep.mubr.bf16.mxu0 %v471
        %855 = vmatmul.mubr.bf16.gmra.mrb[0].mxu0 %v470
        %v856 = vpop.f32.mrb[0].mxu0
        %v857 = vadd.f32 %v405, %v856
        %v858 = vpop.f32.mrb[0].mxu0
        %v859 = vadd.f32 %v409, %v858
        %v860 = vpop.f32.mrb[0].mxu0
        %v861 = vadd.f32 %v405, %v860
        %v862 = vpop.f32.mrb[0].mxu0
        %v863 = vadd.f32 %v409, %v862
        %864 = vmatprep.mubr.bf16.mxu0 %v473
        %865 = vmatmul.mubr.bf16.gmra.mrb[0].mxu0 %v472
        %v866 = vpop.f32.mrb[0].mxu0
        %v867 = vadd.f32 %v405, %v866
        %v868 = vpop.f32.mrb[0].mxu0
        %v869 = vadd.f32 %v409, %v868
        %v870 = vpop.f32.mrb[0].mxu0
        %v871 = vadd.f32 %v405, %v870
        %v872 = vpop.f32.mrb[0].mxu0
        %v873 = vadd.f32 %v409, %v872
        %874 = vmatprep.mubr.bf16.mxu0 %v475
        %875 = vmatmul.mubr.bf16.gmra.mrb[0].mxu0 %v474
        %v876 = vpop.f32.mrb[0].mxu0
        %v877 = vadd.f32 %v405, %v876
        %v878 = vpop.f32.mrb[0].mxu0
        %v879 = vadd.f32 %v409, %v878
        %v880 = vpop.f32.mrb[0].mxu0
        %v881 = vadd.f32 %v405, %v880
        %v882 = vpop.f32.mrb[0].mxu0
        %v883 = vadd.f32 %v409, %v882
        %884 = vmatprep.mubr.bf16.mxu0 %v477
        %885 = vmatmul.mubr.bf16.gmra.mrb[0].mxu0 %v476
        %v886 = vpop.f32.mrb[0].mxu0
        %v887 = vadd.f32 %v405, %v886
        %v888 = vpop.f32.mrb[0].mxu0
        %v889 = vadd.f32 %v409, %v888
        %v890 = vpop.f32.mrb[0].mxu0
        %v891 = vadd.f32 %v405, %v890
        %v892 = vpop.f32.mrb[0].mxu0
        %v893 = vadd.f32 %v409, %v892
        %894 = vmatprep.mubr.bf16.mxu0 %v479
        %895 = vmatmul.mubr.bf16.gmra.mrb[0].mxu0 %v478
        %v896 = vpop.f32.mrb[0].mxu0
        %v897 = vadd.f32 %v405, %v896
        %v898 = vpop.f32.mrb[0].mxu0
        %v899 = vadd.f32 %v409, %v898
        %v900 = vpop.f32.mrb[0].mxu0
        %v901 = vadd.f32 %v405, %v900
        %v902 = vpop.f32.mrb[0].mxu0
        %v903 = vadd.f32 %v409, %v902
        %904 = vmatprep.mubr.bf16.mxu0 %v481
        %905 = vmatmul.mubr.bf16.gmra.mrb[0].mxu0 %v480
        %v906 = vpop.f32.mrb[0].mxu0
        %v907 = vadd.f32 %v405, %v906
        %v908 = vpop.f32.mrb[0].mxu0
        %v909 = vadd.f32 %v409, %v908
        %v910 = vpop.f32.mrb[0].mxu0
        %v911 = vadd.f32 %v405, %v910
        %v912 = vpop.f32.mrb[0].mxu0
        %v913 = vadd.f32 %v409, %v912
        %914 = vmatprep.mubr.bf16.mxu0 %v483
        %915 = vmatmul.mubr.bf16.gmra.mrb[0].mxu0 %v482
        %v916 = vpop.f32.mrb[0].mxu0
        %v917 = vadd.f32 %v405, %v916
        %v918 = vpop.f32.mrb[0].mxu0
        %v919 = vadd.f32 %v409, %v918
        %v920 = vpop.f32.mrb[0].mxu0
        %v921 = vadd.f32 %v405, %v920
        %v922 = vpop.f32.mrb[0].mxu0
        %v923 = vadd.f32 %v409, %v922
        %924 = vmatprep.mubr.bf16.mxu0 %v485
        %925 = vmatmul.mubr.bf16.gmra.mrb[0].mxu0 %v484
        %v926 = vpop.f32.mrb[0].mxu0
        %v927 = vadd.f32 %v405, %v926
        %v928 = vpop.f32.mrb[0].mxu0
        %v929 = vadd.f32 %v409, %v928
        %v930 = vpop.f32.mrb[0].mxu0
        %v931 = vadd.f32 %v405, %v930
        %v932 = vpop.f32.mrb[0].mxu0
        %v933 = vadd.f32 %v409, %v932
        %934 = vdwg.mxu0
        %935 = vmatprep.subr.bf16.mxu0 %v697
        %936 = vmatpush1.bf16.msra.mxu0 %v696
        %937 = vmatprep.subr.bf16.mxu0 %v701
        %938 = vmatpush1.bf16.msra.mxu0 %v700
        %939 = vmatprep.subr.bf16.mxu0 %v705
        %940 = vmatpush1.bf16.msra.mxu0 %v704
        %941 = vmatprep.subr.bf16.mxu0 %v709
        %942 = vmatpush1.bf16.msra.mxu0 %v708
        %943 = vmatprep.subr.bf16.mxu0 %v713
        %944 = vmatpush1.bf16.msra.mxu0 %v712
        %945 = vmatprep.subr.bf16.mxu0 %v717
        %946 = vmatpush1.bf16.msra.mxu0 %v716
        %947 = vmatprep.subr.bf16.mxu0 %v721
        %948 = vmatpush1.bf16.msra.mxu0 %v720
        %949 = vmatprep.subr.bf16.mxu0 %v725
        %950 = vmatpush1.bf16.msra.mxu0 %v724
        %951 = vmatprep.subr.bf16.mxu0 %v729
        %952 = vmatpush1.bf16.msra.mxu0 %v728
        %953 = vmatprep.subr.bf16.mxu0 %v733
        %954 = vmatpush1.bf16.msra.mxu0 %v732
        %955 = vmatprep.subr.bf16.mxu0 %v737
        %956 = vmatpush1.bf16.msra.mxu0 %v736
        %957 = vmatprep.subr.bf16.mxu0 %v741
        %958 = vmatpush1.bf16.msra.mxu0 %v740
        %959 = vmatprep.subr.bf16.mxu0 %v745
        %960 = vmatpush1.bf16.msra.mxu0 %v744
        %961 = vmatprep.subr.bf16.mxu0 %v749
        %962 = vmatpush1.bf16.msra.mxu0 %v748
        %963 = vmatprep.subr.bf16.mxu0 %v753
        %964 = vmatpush1.bf16.msra.mxu0 %v752
        %965 = vmatprep.subr.bf16.mxu0 %v757
        %966 = vmatpush1.bf16.msra.mxu0 %v756
        %967 = vmatprep.mubr.bf16.mxu0 %v471
        %968 = vmatmul.mubr.bf16.gmra.mrb[0].mxu0 %v470
        %v969 = vpop.f32.mrb[0].mxu0
        %v970 = vadd.f32 %v413, %v969
        %v971 = vpop.f32.mrb[0].mxu0
        %v972 = vadd.f32 %v417, %v971
        %v973 = vpop.f32.mrb[0].mxu0
        %v974 = vadd.f32 %v413, %v973
        %v975 = vpop.f32.mrb[0].mxu0
        %v976 = vadd.f32 %v417, %v975
        %977 = vmatprep.mubr.bf16.mxu0 %v473
        %978 = vmatmul.mubr.bf16.gmra.mrb[0].mxu0 %v472
        %v979 = vpop.f32.mrb[0].mxu0
        %v980 = vadd.f32 %v413, %v979
        %v981 = vpop.f32.mrb[0].mxu0
        %v982 = vadd.f32 %v417, %v981
        %v983 = vpop.f32.mrb[0].mxu0
        %v984 = vadd.f32 %v413, %v983
        %v985 = vpop.f32.mrb[0].mxu0
        %v986 = vadd.f32 %v417, %v985
        %987 = vmatprep.mubr.bf16.mxu0 %v475
        %988 = vmatmul.mubr.bf16.gmra.mrb[0].mxu0 %v474
        %v989 = vpop.f32.mrb[0].mxu0
        %v990 = vadd.f32 %v413, %v989
        %v991 = vpop.f32.mrb[0].mxu0
        %v992 = vadd.f32 %v417, %v991
        %v993 = vpop.f32.mrb[0].mxu0
        %v994 = vadd.f32 %v413, %v993
        %v995 = vpop.f32.mrb[0].mxu0
        %v996 = vadd.f32 %v417, %v995
        %997 = vmatprep.mubr.bf16.mxu0 %v477
        %998 = vmatmul.mubr.bf16.gmra.mrb[0].mxu0 %v476
        %v999 = vpop.f32.mrb[0].mxu0
        %v1000 = vadd.f32 %v413, %v999
        %v1001 = vpop.f32.mrb[0].mxu0
        %v1002 = vadd.f32 %v417, %v1001
        %v1003 = vpop.f32.mrb[0].mxu0
        %v1004 = vadd.f32 %v413, %v1003
        %v1005 = vpop.f32.mrb[0].mxu0
        %v1006 = vadd.f32 %v417, %v1005
        %1007 = vmatprep.mubr.bf16.mxu0 %v479
        %1008 = vmatmul.mubr.bf16.gmra.mrb[0].mxu0 %v478
        %v1009 = vpop.f32.mrb[0].mxu0
        %v1010 = vadd.f32 %v413, %v1009
        %v1011 = vpop.f32.mrb[0].mxu0
        %v1012 = vadd.f32 %v417, %v1011
        %v1013 = vpop.f32.mrb[0].mxu0
        %v1014 = vadd.f32 %v413, %v1013
        %v1015 = vpop.f32.mrb[0].mxu0
        %v1016 = vadd.f32 %v417, %v1015
        %1017 = vmatprep.mubr.bf16.mxu0 %v481
        %1018 = vmatmul.mubr.bf16.gmra.mrb[0].mxu0 %v480
        %v1019 = vpop.f32.mrb[0].mxu0
        %v1020 = vadd.f32 %v413, %v1019
        %v1021 = vpop.f32.mrb[0].mxu0
        %v1022 = vadd.f32 %v417, %v1021
        %v1023 = vpop.f32.mrb[0].mxu0
        %v1024 = vadd.f32 %v413, %v1023
        %v1025 = vpop.f32.mrb[0].mxu0
        %v1026 = vadd.f32 %v417, %v1025
        %1027 = vmatprep.mubr.bf16.mxu0 %v483
        %1028 = vmatmul.mubr.bf16.gmra.mrb[0].mxu0 %v482
        %v1029 = vpop.f32.mrb[0].mxu0
        %v1030 = vadd.f32 %v413, %v1029
        %v1031 = vpop.f32.mrb[0].mxu0
        %v1032 = vadd.f32 %v417, %v1031
        %v1033 = vpop.f32.mrb[0].mxu0
        %v1034 = vadd.f32 %v413, %v1033
        %v1035 = vpop.f32.mrb[0].mxu0
        %v1036 = vadd.f32 %v417, %v1035
        %1037 = vmatprep.mubr.bf16.mxu0 %v485
        %1038 = vmatmul.mubr.bf16.gmra.mrb[0].mxu0 %v484
        %v1039 = vpop.f32.mrb[0].mxu0
        %v1040 = vadd.f32 %v413, %v1039
        %v1041 = vpop.f32.mrb[0].mxu0
        %v1042 = vadd.f32 %v417, %v1041
        %v1043 = vpop.f32.mrb[0].mxu0
        %v1044 = vadd.f32 %v413, %v1043
        %v1045 = vpop.f32.mrb[0].mxu0
        %v1046 = vadd.f32 %v417, %v1045
        %1047 = vdwg.mxu0
        %v1048 = vpack.c.bf16 %v861, %v857
        %v1049 = vpack.c.bf16 %v863, %v859
        %v1050 = vpack.c.bf16 %v974, %v970
        %v1051 = vpack.c.bf16 %v976, %v972
        %v1052 = vpack.c.bf16 %v871, %v867
        %v1053 = vpack.c.bf16 %v873, %v869
        %v1054 = vpack.c.bf16 %v984, %v980
        %v1055 = vpack.c.bf16 %v986, %v982
        %v1056 = vpack.c.bf16 %v881, %v877
        %v1057 = vpack.c.bf16 %v883, %v879
        %v1058 = vpack.c.bf16 %v994, %v990
        %v1059 = vpack.c.bf16 %v996, %v992
        %v1060 = vpack.c.bf16 %v891, %v887
        %v1061 = vpack.c.bf16 %v893, %v889
        %v1062 = vpack.c.bf16 %v1004, %v1000
        %v1063 = vpack.c.bf16 %v1006, %v1002
        %v1064 = vpack.c.bf16 %v901, %v897
        %v1065 = vpack.c.bf16 %v903, %v899
        %v1066 = vpack.c.bf16 %v1014, %v1010
        %v1067 = vpack.c.bf16 %v1016, %v1012
        %v1068 = vpack.c.bf16 %v911, %v907
        %v1069 = vpack.c.bf16 %v913, %v909
        %v1070 = vpack.c.bf16 %v1024, %v1020
        %v1071 = vpack.c.bf16 %v1026, %v1022
        %v1072 = vpack.c.bf16 %v921, %v917
        %v1073 = vpack.c.bf16 %v923, %v919
        %v1074 = vpack.c.bf16 %v1034, %v1030
        %v1075 = vpack.c.bf16 %v1036, %v1032
        %v1076 = vpack.c.bf16 %v931, %v927
        %v1077 = vpack.c.bf16 %v933, %v929
        %v1078 = vpack.c.bf16 %v1044, %v1040
        %v1079 = vpack.c.bf16 %v1046, %v1042
        %v1080 = vmul.bf16 %v1048, %v1048
        %v1081 = vmul.bf16 %v1049, %v1049
        %v1082 = vmul.bf16 %v1050, %v1050
        %v1083 = vmul.bf16 %v1051, %v1051
        %v1084 = vmul.bf16 %v1052, %v1052
        %v1085 = vmul.bf16 %v1053, %v1053
        %v1086 = vmul.bf16 %v1054, %v1054
        %v1087 = vmul.bf16 %v1055, %v1055
        %v1088 = vmul.bf16 %v1056, %v1056
        %v1089 = vmul.bf16 %v1057, %v1057
        %v1090 = vmul.bf16 %v1058, %v1058
        %v1091 = vmul.bf16 %v1059, %v1059
        %v1092 = vmul.bf16 %v1060, %v1060
        %v1093 = vmul.bf16 %v1061, %v1061
        %v1094 = vmul.bf16 %v1062, %v1062
        %v1095 = vmul.bf16 %v1063, %v1063
        %v1096 = vmul.bf16 %v1064, %v1064
        %v1097 = vmul.bf16 %v1065, %v1065
        %v1098 = vmul.bf16 %v1066, %v1066
        %v1099 = vmul.bf16 %v1067, %v1067
        %v1100 = vmul.bf16 %v1068, %v1068
        %v1101 = vmul.bf16 %v1069, %v1069
        %v1102 = vmul.bf16 %v1070, %v1070
        %v1103 = vmul.bf16 %v1071, %v1071
        %v1104 = vmul.bf16 %v1072, %v1072
        %v1105 = vmul.bf16 %v1073, %v1073
        %v1106 = vmul.bf16 %v1074, %v1074
        %v1107 = vmul.bf16 %v1075, %v1075
        %v1108 = vmul.bf16 %v1076, %v1076
        %v1109 = vmul.bf16 %v1077, %v1077
        %v1110 = vmul.bf16 %v1078, %v1078
        %v1111 = vmul.bf16 %v1079, %v1079
        %v1112 = vmul.bf16 %v1080, %v1048
        %v1113 = vmul.bf16 %v1081, %v1049
        %v1114 = vmul.bf16 %v1082, %v1050
        %v1115 = vmul.bf16 %v1083, %v1051
        %v1116 = vmul.bf16 %v1084, %v1052
        %v1117 = vmul.bf16 %v1085, %v1053
        %v1118 = vmul.bf16 %v1086, %v1054
        %v1119 = vmul.bf16 %v1087, %v1055
        %v1120 = vmul.bf16 %v1088, %v1056
        %v1121 = vmul.bf16 %v1089, %v1057
        %v1122 = vmul.bf16 %v1090, %v1058
        %v1123 = vmul.bf16 %v1091, %v1059
        %v1124 = vmul.bf16 %v1092, %v1060
        %v1125 = vmul.bf16 %v1093, %v1061
        %v1126 = vmul.bf16 %v1094, %v1062
        %v1127 = vmul.bf16 %v1095, %v1063
        %v1128 = vmul.bf16 %v1096, %v1064
        %v1129 = vmul.bf16 %v1097, %v1065
        %v1130 = vmul.bf16 %v1098, %v1066
        %v1131 = vmul.bf16 %v1099, %v1067
        %v1132 = vmul.bf16 %v1100, %v1068
        %v1133 = vmul.bf16 %v1101, %v1069
        %v1134 = vmul.bf16 %v1102, %v1070
        %v1135 = vmul.bf16 %v1103, %v1071
        %v1136 = vmul.bf16 %v1104, %v1072
        %v1137 = vmul.bf16 %v1105, %v1073
        %v1138 = vmul.bf16 %v1106, %v1074
        %v1139 = vmul.bf16 %v1107, %v1075
        %v1140 = vmul.bf16 %v1108, %v1076
        %v1141 = vmul.bf16 %v1109, %v1077
        %v1142 = vmul.bf16 %v1110, %v1078
        %v1143 = vmul.bf16 %v1111, %v1079
        %v1144 = vmul.bf16 %v1112, 1027030327
        %v1145 = vmul.bf16 %v1113, 1027030327
        %v1146 = vmul.bf16 %v1114, 1027030327
        %v1147 = vmul.bf16 %v1115, 1027030327
        %v1148 = vmul.bf16 %v1116, 1027030327
        %v1149 = vmul.bf16 %v1117, 1027030327
        %v1150 = vmul.bf16 %v1118, 1027030327
        %v1151 = vmul.bf16 %v1119, 1027030327
        %v1152 = vmul.bf16 %v1120, 1027030327
        %v1153 = vmul.bf16 %v1121, 1027030327
        %v1154 = vmul.bf16 %v1122, 1027030327
        %v1155 = vmul.bf16 %v1123, 1027030327
        %v1156 = vmul.bf16 %v1124, 1027030327
        %v1157 = vmul.bf16 %v1125, 1027030327
        %v1158 = vmul.bf16 %v1126, 1027030327
        %v1159 = vmul.bf16 %v1127, 1027030327
        %v1160 = vmul.bf16 %v1128, 1027030327
        %v1161 = vmul.bf16 %v1129, 1027030327
        %v1162 = vmul.bf16 %v1130, 1027030327
        %v1163 = vmul.bf16 %v1131, 1027030327
        %v1164 = vmul.bf16 %v1132, 1027030327
        %v1165 = vmul.bf16 %v1133, 1027030327
        %v1166 = vmul.bf16 %v1134, 1027030327
        %v1167 = vmul.bf16 %v1135, 1027030327
        %v1168 = vmul.bf16 %v1136, 1027030327
        %v1169 = vmul.bf16 %v1137, 1027030327
        %v1170 = vmul.bf16 %v1138, 1027030327
        %v1171 = vmul.bf16 %v1139, 1027030327
        %v1172 = vmul.bf16 %v1140, 1027030327
        %v1173 = vmul.bf16 %v1141, 1027030327
        %v1174 = vmul.bf16 %v1142, 1027030327
        %v1175 = vmul.bf16 %v1143, 1027030327
        %v1176 = vadd.bf16 %v1048, %v1144
        %v1177 = vadd.bf16 %v1049, %v1145
        %v1178 = vadd.bf16 %v1050, %v1146
        %v1179 = vadd.bf16 %v1051, %v1147
        %v1180 = vadd.bf16 %v1052, %v1148
        %v1181 = vadd.bf16 %v1053, %v1149
        %v1182 = vadd.bf16 %v1054, %v1150
        %v1183 = vadd.bf16 %v1055, %v1151
        %v1184 = vadd.bf16 %v1056, %v1152
        %v1185 = vadd.bf16 %v1057, %v1153
        %v1186 = vadd.bf16 %v1058, %v1154
        %v1187 = vadd.bf16 %v1059, %v1155
        %v1188 = vadd.bf16 %v1060, %v1156
        %v1189 = vadd.bf16 %v1061, %v1157
        %v1190 = vadd.bf16 %v1062, %v1158
        %v1191 = vadd.bf16 %v1063, %v1159
        %v1192 = vadd.bf16 %v1064, %v1160
        %v1193 = vadd.bf16 %v1065, %v1161
        %v1194 = vadd.bf16 %v1066, %v1162
        %v1195 = vadd.bf16 %v1067, %v1163
        %v1196 = vadd.bf16 %v1068, %v1164
        %v1197 = vadd.bf16 %v1069, %v1165
        %v1198 = vadd.bf16 %v1070, %v1166
        %v1199 = vadd.bf16 %v1071, %v1167
        %v1200 = vadd.bf16 %v1072, %v1168
        %v1201 = vadd.bf16 %v1073, %v1169
        %v1202 = vadd.bf16 %v1074, %v1170
        %v1203 = vadd.bf16 %v1075, %v1171
        %v1204 = vadd.bf16 %v1076, %v1172
        %v1205 = vadd.bf16 %v1077, %v1173
        %v1206 = vadd.bf16 %v1078, %v1174
        %v1207 = vadd.bf16 %v1079, %v1175
        %v1208 = vmul.bf16 %v1176, 1070350284
        %v1209 = vmul.bf16 %v1177, 1070350284
        %v1210 = vmul.bf16 %v1178, 1070350284
        %v1211 = vmul.bf16 %v1179, 1070350284
        %v1212 = vmul.bf16 %v1180, 1070350284
        %v1213 = vmul.bf16 %v1181, 1070350284
        %v1214 = vmul.bf16 %v1182, 1070350284
        %v1215 = vmul.bf16 %v1183, 1070350284
        %v1216 = vmul.bf16 %v1184, 1070350284
        %v1217 = vmul.bf16 %v1185, 1070350284
        %v1218 = vmul.bf16 %v1186, 1070350284
        %v1219 = vmul.bf16 %v1187, 1070350284
        %v1220 = vmul.bf16 %v1188, 1070350284
        %v1221 = vmul.bf16 %v1189, 1070350284
        %v1222 = vmul.bf16 %v1190, 1070350284
        %v1223 = vmul.bf16 %v1191, 1070350284
        %v1224 = vmul.bf16 %v1192, 1070350284
        %v1225 = vmul.bf16 %v1193, 1070350284
        %v1226 = vmul.bf16 %v1194, 1070350284
        %v1227 = vmul.bf16 %v1195, 1070350284
        %v1228 = vmul.bf16 %v1196, 1070350284
        %v1229 = vmul.bf16 %v1197, 1070350284
        %v1230 = vmul.bf16 %v1198, 1070350284
        %v1231 = vmul.bf16 %v1199, 1070350284
        %v1232 = vmul.bf16 %v1200, 1070350284
        %v1233 = vmul.bf16 %v1201, 1070350284
        %v1234 = vmul.bf16 %v1202, 1070350284
        %v1235 = vmul.bf16 %v1203, 1070350284
        %v1236 = vmul.bf16 %v1204, 1070350284
        %v1237 = vmul.bf16 %v1205, 1070350284
        %v1238 = vmul.bf16 %v1206, 1070350284
        %v1239 = vmul.bf16 %v1207, 1070350284
        %v1240 = vxor.u32 %v1208, 2147516416
        %v1241 = vxor.u32 %v1209, 2147516416
        %v1242 = vxor.u32 %v1210, 2147516416
        %v1243 = vxor.u32 %v1211, 2147516416
        %v1244 = vxor.u32 %v1212, 2147516416
        %v1245 = vxor.u32 %v1213, 2147516416
        %v1246 = vxor.u32 %v1214, 2147516416
        %v1247 = vxor.u32 %v1215, 2147516416
        %v1248 = vxor.u32 %v1216, 2147516416
        %v1249 = vxor.u32 %v1217, 2147516416
        %v1250 = vxor.u32 %v1218, 2147516416
        %v1251 = vxor.u32 %v1219, 2147516416
        %v1252 = vxor.u32 %v1220, 2147516416
        %v1253 = vxor.u32 %v1221, 2147516416
        %v1254 = vxor.u32 %v1222, 2147516416
        %v1255 = vxor.u32 %v1223, 2147516416
        %v1256 = vxor.u32 %v1224, 2147516416
        %v1257 = vxor.u32 %v1225, 2147516416
        %v1258 = vxor.u32 %v1226, 2147516416
        %v1259 = vxor.u32 %v1227, 2147516416
        %v1260 = vxor.u32 %v1228, 2147516416
        %v1261 = vxor.u32 %v1229, 2147516416
        %v1262 = vxor.u32 %v1230, 2147516416
        %v1263 = vxor.u32 %v1231, 2147516416
        %v1264 = vxor.u32 %v1232, 2147516416
        %v1265 = vxor.u32 %v1233, 2147516416
        %v1266 = vxor.u32 %v1234, 2147516416
        %v1267 = vxor.u32 %v1235, 2147516416
        %v1268 = vxor.u32 %v1236, 2147516416
        %v1269 = vxor.u32 %v1237, 2147516416
        %v1270 = vxor.u32 %v1238, 2147516416
        %v1271 = vxor.u32 %v1239, 2147516416
        %v1273 = vmul.bf16 %v1240, 1069105081
        %v1274 = vpow.bf16.pop %v1273
        %v1276 = vmul.bf16 %v1241, 1069105081
        %v1277 = vpow.bf16.pop %v1276
        %v1279 = vmul.bf16 %v1242, 1069105081
        %v1280 = vpow.bf16.pop %v1279
        %v1282 = vmul.bf16 %v1243, 1069105081
        %v1283 = vpow.bf16.pop %v1282
        %v1285 = vmul.bf16 %v1244, 1069105081
        %v1286 = vpow.bf16.pop %v1285
        %v1288 = vmul.bf16 %v1245, 1069105081
        %v1289 = vpow.bf16.pop %v1288
        %v1291 = vmul.bf16 %v1246, 1069105081
        %v1292 = vpow.bf16.pop %v1291
        %v1294 = vmul.bf16 %v1247, 1069105081
        %v1295 = vpow.bf16.pop %v1294
        %v1297 = vmul.bf16 %v1248, 1069105081
        %v1298 = vpow.bf16.pop %v1297
        %v1300 = vmul.bf16 %v1249, 1069105081
        %v1301 = vpow.bf16.pop %v1300
        %v1303 = vmul.bf16 %v1250, 1069105081
        %v1304 = vpow.bf16.pop %v1303
        %v1306 = vmul.bf16 %v1251, 1069105081
        %v1307 = vpow.bf16.pop %v1306
        %v1309 = vmul.bf16 %v1252, 1069105081
        %v1310 = vpow.bf16.pop %v1309
        %v1312 = vmul.bf16 %v1253, 1069105081
        %v1313 = vpow.bf16.pop %v1312
        %v1315 = vmul.bf16 %v1254, 1069105081
        %v1316 = vpow.bf16.pop %v1315
        %v1318 = vmul.bf16 %v1255, 1069105081
        %v1319 = vpow.bf16.pop %v1318
        %v1321 = vmul.bf16 %v1256, 1069105081
        %v1322 = vpow.bf16.pop %v1321
        %v1324 = vmul.bf16 %v1257, 1069105081
        %v1325 = vpow.bf16.pop %v1324
        %v1327 = vmul.bf16 %v1258, 1069105081
        %v1328 = vpow.bf16.pop %v1327
        %v1330 = vmul.bf16 %v1259, 1069105081
        %v1331 = vpow.bf16.pop %v1330
        %v1333 = vmul.bf16 %v1260, 1069105081
        %v1334 = vpow.bf16.pop %v1333
        %v1336 = vmul.bf16 %v1261, 1069105081
        %v1337 = vpow.bf16.pop %v1336
        %v1339 = vmul.bf16 %v1262, 1069105081
        %v1340 = vpow.bf16.pop %v1339
        %v1342 = vmul.bf16 %v1263, 1069105081
        %v1343 = vpow.bf16.pop %v1342
        %v1345 = vmul.bf16 %v1264, 1069105081
        %v1346 = vpow.bf16.pop %v1345
        %v1348 = vmul.bf16 %v1265, 1069105081
        %v1349 = vpow.bf16.pop %v1348
        %v1351 = vmul.bf16 %v1266, 1069105081
        %v1352 = vpow.bf16.pop %v1351
        %v1354 = vmul.bf16 %v1267, 1069105081
        %v1355 = vpow.bf16.pop %v1354
        %v1357 = vmul.bf16 %v1268, 1069105081
        %v1358 = vpow.bf16.pop %v1357
        %v1360 = vmul.bf16 %v1269, 1069105081
        %v1361 = vpow.bf16.pop %v1360
        %v1363 = vmul.bf16 %v1270, 1069105081
        %v1364 = vpow.bf16.pop %v1363
        %v1366 = vmul.bf16 %v1271, 1069105081
        %v1367 = vpow.bf16.pop %v1366
        %v1368 = vadd.bf16 %v1274, 1065369472
        %v1369 = vadd.bf16 %v1277, 1065369472
        %v1370 = vadd.bf16 %v1280, 1065369472
        %v1371 = vadd.bf16 %v1283, 1065369472
        %v1372 = vadd.bf16 %v1286, 1065369472
        %v1373 = vadd.bf16 %v1289, 1065369472
        %v1374 = vadd.bf16 %v1292, 1065369472
        %v1375 = vadd.bf16 %v1295, 1065369472
        %v1376 = vadd.bf16 %v1298, 1065369472
        %v1377 = vadd.bf16 %v1301, 1065369472
        %v1378 = vadd.bf16 %v1304, 1065369472
        %v1379 = vadd.bf16 %v1307, 1065369472
        %v1380 = vadd.bf16 %v1310, 1065369472
        %v1381 = vadd.bf16 %v1313, 1065369472
        %v1382 = vadd.bf16 %v1316, 1065369472
        %v1383 = vadd.bf16 %v1319, 1065369472
        %v1384 = vadd.bf16 %v1322, 1065369472
        %v1385 = vadd.bf16 %v1325, 1065369472
        %v1386 = vadd.bf16 %v1328, 1065369472
        %v1387 = vadd.bf16 %v1331, 1065369472
        %v1388 = vadd.bf16 %v1334, 1065369472
        %v1389 = vadd.bf16 %v1337, 1065369472
        %v1390 = vadd.bf16 %v1340, 1065369472
        %v1391 = vadd.bf16 %v1343, 1065369472
        %v1392 = vadd.bf16 %v1346, 1065369472
        %v1393 = vadd.bf16 %v1349, 1065369472
        %v1394 = vadd.bf16 %v1352, 1065369472
        %v1395 = vadd.bf16 %v1355, 1065369472
        %v1396 = vadd.bf16 %v1358, 1065369472
        %v1397 = vadd.bf16 %v1361, 1065369472
        %v1398 = vadd.bf16 %v1364, 1065369472
        %v1399 = vadd.bf16 %v1367, 1065369472
        %v1400 = vrcp.bf16.pop %v1368
        %v1401 = vmul.bf16 1065369472, %v1400
        %v1402 = vrcp.bf16.pop %v1369
        %v1403 = vmul.bf16 1065369472, %v1402
        %v1404 = vrcp.bf16.pop %v1370
        %v1405 = vmul.bf16 1065369472, %v1404
        %v1406 = vrcp.bf16.pop %v1371
        %v1407 = vmul.bf16 1065369472, %v1406
        %v1408 = vrcp.bf16.pop %v1372
        %v1409 = vmul.bf16 1065369472, %v1408
        %v1410 = vrcp.bf16.pop %v1373
        %v1411 = vmul.bf16 1065369472, %v1410
        %v1412 = vrcp.bf16.pop %v1374
        %v1413 = vmul.bf16 1065369472, %v1412
        %v1414 = vrcp.bf16.pop %v1375
        %v1415 = vmul.bf16 1065369472, %v1414
        %v1416 = vrcp.bf16.pop %v1376
        %v1417 = vmul.bf16 1065369472, %v1416
        %v1418 = vrcp.bf16.pop %v1377
        %v1419 = vmul.bf16 1065369472, %v1418
        %v1420 = vrcp.bf16.pop %v1378
        %v1421 = vmul.bf16 1065369472, %v1420
        %v1422 = vrcp.bf16.pop %v1379
        %v1423 = vmul.bf16 1065369472, %v1422
        %v1424 = vrcp.bf16.pop %v1380
        %v1425 = vmul.bf16 1065369472, %v1424
        %v1426 = vrcp.bf16.pop %v1381
        %v1427 = vmul.bf16 1065369472, %v1426
        %v1428 = vrcp.bf16.pop %v1382
        %v1429 = vmul.bf16 1065369472, %v1428
        %v1430 = vrcp.bf16.pop %v1383
        %v1431 = vmul.bf16 1065369472, %v1430
        %v1432 = vrcp.bf16.pop %v1384
        %v1433 = vmul.bf16 1065369472, %v1432
        %v1434 = vrcp.bf16.pop %v1385
        %v1435 = vmul.bf16 1065369472, %v1434
        %v1436 = vrcp.bf16.pop %v1386
        %v1437 = vmul.bf16 1065369472, %v1436
        %v1438 = vrcp.bf16.pop %v1387
        %v1439 = vmul.bf16 1065369472, %v1438
        %v1440 = vrcp.bf16.pop %v1388
        %v1441 = vmul.bf16 1065369472, %v1440
        %v1442 = vrcp.bf16.pop %v1389
        %v1443 = vmul.bf16 1065369472, %v1442
        %v1444 = vrcp.bf16.pop %v1390
        %v1445 = vmul.bf16 1065369472, %v1444
        %v1446 = vrcp.bf16.pop %v1391
        %v1447 = vmul.bf16 1065369472, %v1446
        %v1448 = vrcp.bf16.pop %v1392
        %v1449 = vmul.bf16 1065369472, %v1448
        %v1450 = vrcp.bf16.pop %v1393
        %v1451 = vmul.bf16 1065369472, %v1450
        %v1452 = vrcp.bf16.pop %v1394
        %v1453 = vmul.bf16 1065369472, %v1452
        %v1454 = vrcp.bf16.pop %v1395
        %v1455 = vmul.bf16 1065369472, %v1454
        %v1456 = vrcp.bf16.pop %v1396
        %v1457 = vmul.bf16 1065369472, %v1456
        %v1458 = vrcp.bf16.pop %v1397
        %v1459 = vmul.bf16 1065369472, %v1458
        %v1460 = vrcp.bf16.pop %v1398
        %v1461 = vmul.bf16 1065369472, %v1460
        %v1462 = vrcp.bf16.pop %v1399
        %v1463 = vmul.bf16 1065369472, %v1462
        %v1464 = vmul.bf16 %v1048, %v1401
        %v1465 = vmul.bf16 %v1049, %v1403
        %v1466 = vmul.bf16 %v1050, %v1405
        %v1467 = vmul.bf16 %v1051, %v1407
        %v1468 = vmul.bf16 %v1052, %v1409
        %v1469 = vmul.bf16 %v1053, %v1411
        %v1470 = vmul.bf16 %v1054, %v1413
        %v1471 = vmul.bf16 %v1055, %v1415
        %v1472 = vmul.bf16 %v1056, %v1417
        %v1473 = vmul.bf16 %v1057, %v1419
        %v1474 = vmul.bf16 %v1058, %v1421
        %v1475 = vmul.bf16 %v1059, %v1423
        %v1476 = vmul.bf16 %v1060, %v1425
        %v1477 = vmul.bf16 %v1061, %v1427
        %v1478 = vmul.bf16 %v1062, %v1429
        %v1479 = vmul.bf16 %v1063, %v1431
        %v1480 = vmul.bf16 %v1064, %v1433
        %v1481 = vmul.bf16 %v1065, %v1435
        %v1482 = vmul.bf16 %v1066, %v1437
        %v1483 = vmul.bf16 %v1067, %v1439
        %v1484 = vmul.bf16 %v1068, %v1441
        %v1485 = vmul.bf16 %v1069, %v1443
        %v1486 = vmul.bf16 %v1070, %v1445
        %v1487 = vmul.bf16 %v1071, %v1447
        %v1488 = vmul.bf16 %v1072, %v1449
        %v1489 = vmul.bf16 %v1073, %v1451
        %v1490 = vmul.bf16 %v1074, %v1453
        %v1491 = vmul.bf16 %v1075, %v1455
        %v1492 = vmul.bf16 %v1076, %v1457
        %v1493 = vmul.bf16 %v1077, %v1459
        %v1494 = vmul.bf16 %v1078, %v1461
        %v1495 = vmul.bf16 %v1079, %v1463
        %v1496 = vld [vmem:[#allocation8] sm:$0xff]
        %v1497 = vld [vmem:[#allocation8 + $0x8] sm:$0xff]
        %v1498 = vld [vmem:[#allocation8 + $0x10] sm:$0xff]
        %v1499 = vld [vmem:[#allocation8 + $0x18] sm:$0xff]
        %v1500 = vld [vmem:[#allocation8 + $0x20] sm:$0xff]
        %v1501 = vld [vmem:[#allocation8 + $0x28] sm:$0xff]
        %v1502 = vld [vmem:[#allocation8 + $0x30] sm:$0xff]
        %v1503 = vld [vmem:[#allocation8 + $0x38] sm:$0xff]
        %v1504 = vld [vmem:[#allocation8 + $0x40] sm:$0xff]
        %v1505 = vld [vmem:[#allocation8 + $0x48] sm:$0xff]
        %v1506 = vld [vmem:[#allocation8 + $0x50] sm:$0xff]
        %v1507 = vld [vmem:[#allocation8 + $0x58] sm:$0xff]
        %v1508 = vld [vmem:[#allocation8 + $0x60] sm:$0xff]
        %v1509 = vld [vmem:[#allocation8 + $0x68] sm:$0xff]
        %v1510 = vld [vmem:[#allocation8 + $0x70] sm:$0xff]
        %v1511 = vld [vmem:[#allocation8 + $0x78] sm:$0xff]
        %v1512 = vld [vmem:[#allocation8 + $0x80] sm:$0xff]
        %v1513 = vld [vmem:[#allocation8 + $0x88] sm:$0xff]
        %v1514 = vld [vmem:[#allocation8 + $0x90] sm:$0xff]
        %v1515 = vld [vmem:[#allocation8 + $0x98] sm:$0xff]
        %v1516 = vld [vmem:[#allocation8 + $0xa0] sm:$0xff]
        %v1517 = vld [vmem:[#allocation8 + $0xa8] sm:$0xff]
        %v1518 = vld [vmem:[#allocation8 + $0xb0] sm:$0xff]
        %v1519 = vld [vmem:[#allocation8 + $0xb8] sm:$0xff]
        %v1520 = vld [vmem:[#allocation8 + $0xc0] sm:$0xff]
        %v1521 = vld [vmem:[#allocation8 + $0xc8] sm:$0xff]
        %v1522 = vld [vmem:[#allocation8 + $0xd0] sm:$0xff]
        %v1523 = vld [vmem:[#allocation8 + $0xd8] sm:$0xff]
        %v1524 = vld [vmem:[#allocation8 + $0xe0] sm:$0xff]
        %v1525 = vld [vmem:[#allocation8 + $0xe8] sm:$0xff]
        %v1526 = vld [vmem:[#allocation8 + $0xf0] sm:$0xff]
        %v1527 = vld [vmem:[#allocation8 + $0xf8] sm:$0xff]
        %v1528 = vld [vmem:[#allocation8 + $0x100] sm:$0xff]
        %v1529 = vld [vmem:[#allocation8 + $0x108] sm:$0xff]
        %v1530 = vld [vmem:[#allocation8 + $0x110] sm:$0xff]
        %v1531 = vld [vmem:[#allocation8 + $0x118] sm:$0xff]
        %v1532 = vld [vmem:[#allocation8 + $0x120] sm:$0xff]
        %v1533 = vld [vmem:[#allocation8 + $0x128] sm:$0xff]
        %v1534 = vld [vmem:[#allocation8 + $0x130] sm:$0xff]
        %v1535 = vld [vmem:[#allocation8 + $0x138] sm:$0xff]
        %v1536 = vld [vmem:[#allocation8 + $0x140] sm:$0xff]
        %v1537 = vld [vmem:[#allocation8 + $0x148] sm:$0xff]
        %v1538 = vld [vmem:[#allocation8 + $0x150] sm:$0xff]
        %v1539 = vld [vmem:[#allocation8 + $0x158] sm:$0xff]
        %v1540 = vld [vmem:[#allocation8 + $0x160] sm:$0xff]
        %v1541 = vld [vmem:[#allocation8 + $0x168] sm:$0xff]
        %v1542 = vld [vmem:[#allocation8 + $0x170] sm:$0xff]
        %v1543 = vld [vmem:[#allocation8 + $0x178] sm:$0xff]
        %v1544 = vld [vmem:[#allocation8 + $0x180] sm:$0xff]
        %v1545 = vld [vmem:[#allocation8 + $0x188] sm:$0xff]
        %v1546 = vld [vmem:[#allocation8 + $0x190] sm:$0xff]
        %v1547 = vld [vmem:[#allocation8 + $0x198] sm:$0xff]
        %v1548 = vld [vmem:[#allocation8 + $0x1a0] sm:$0xff]
        %v1549 = vld [vmem:[#allocation8 + $0x1a8] sm:$0xff]
        %v1550 = vld [vmem:[#allocation8 + $0x1b0] sm:$0xff]
        %v1551 = vld [vmem:[#allocation8 + $0x1b8] sm:$0xff]
        %v1552 = vld [vmem:[#allocation8 + $0x1c0] sm:$0xff]
        %v1553 = vld [vmem:[#allocation8 + $0x1c8] sm:$0xff]
        %v1554 = vld [vmem:[#allocation8 + $0x1d0] sm:$0xff]
        %v1555 = vld [vmem:[#allocation8 + $0x1d8] sm:$0xff]
        %v1556 = vld [vmem:[#allocation8 + $0x1e0] sm:$0xff]
        %v1557 = vld [vmem:[#allocation8 + $0x1e8] sm:$0xff]
        %v1558 = vld [vmem:[#allocation8 + $0x1f0] sm:$0xff]
        %v1559 = vld [vmem:[#allocation8 + $0x1f8] sm:$0xff]
        %v1560 = vld [vmem:[#allocation10] sm:$0x3]
        %v1562 = vlaneseq
        %v1563 = vshrl.u32 %v1562, 7
        %v1564 = vsub.s32 0, %v1563
        %v1565 = vrot.slane %v1560, %v1564
        %v1566 = vlaneseq
        %v1567 = vshrl.u32 %v1566, 7
        %v1568 = vsub.s32 1, %v1567
        %v1569 = vrot.slane %v1560, %v1568
        %v1636 = vunpack.c.l.b16 %v1496
        %v1637 = vunpack.c.h.b16 %v1496
        %v1638 = vunpack.c.l.b16 %v1497
        %v1639 = vunpack.c.h.b16 %v1497
        %v1640 = vunpack.c.l.b16 %v1498
        %v1641 = vunpack.c.h.b16 %v1498
        %v1642 = vunpack.c.l.b16 %v1499
        %v1643 = vunpack.c.h.b16 %v1499
        %v1644 = vunpack.c.l.b16 %v1500
        %v1645 = vunpack.c.h.b16 %v1500
        %v1646 = vunpack.c.l.b16 %v1501
        %v1647 = vunpack.c.h.b16 %v1501
        %v1648 = vunpack.c.l.b16 %v1502
        %v1649 = vunpack.c.h.b16 %v1502
        %v1650 = vunpack.c.l.b16 %v1503
        %v1651 = vunpack.c.h.b16 %v1503
        %v1652 = vunpack.c.l.b16 %v1504
        %v1653 = vunpack.c.h.b16 %v1504
        %v1654 = vunpack.c.l.b16 %v1505
        %v1655 = vunpack.c.h.b16 %v1505
        %v1656 = vunpack.c.l.b16 %v1506
        %v1657 = vunpack.c.h.b16 %v1506
        %v1658 = vunpack.c.l.b16 %v1507
        %v1659 = vunpack.c.h.b16 %v1507
        %v1660 = vunpack.c.l.b16 %v1508
        %v1661 = vunpack.c.h.b16 %v1508
        %v1662 = vunpack.c.l.b16 %v1509
        %v1663 = vunpack.c.h.b16 %v1509
        %v1664 = vunpack.c.l.b16 %v1510
        %v1665 = vunpack.c.h.b16 %v1510
        %v1666 = vunpack.c.l.b16 %v1511
        %v1667 = vunpack.c.h.b16 %v1511
        %v1668 = vunpack.c.l.b16 %v1512
        %v1669 = vunpack.c.h.b16 %v1512
        %v1670 = vunpack.c.l.b16 %v1513
        %v1671 = vunpack.c.h.b16 %v1513
        %v1672 = vunpack.c.l.b16 %v1514
        %v1673 = vunpack.c.h.b16 %v1514
        %v1674 = vunpack.c.l.b16 %v1515
        %v1675 = vunpack.c.h.b16 %v1515
        %v1676 = vunpack.c.l.b16 %v1516
        %v1677 = vunpack.c.h.b16 %v1516
        %v1678 = vunpack.c.l.b16 %v1517
        %v1679 = vunpack.c.h.b16 %v1517
        %v1680 = vunpack.c.l.b16 %v1518
        %v1681 = vunpack.c.h.b16 %v1518
        %v1682 = vunpack.c.l.b16 %v1519
        %v1683 = vunpack.c.h.b16 %v1519
        %v1684 = vunpack.c.l.b16 %v1520
        %v1685 = vunpack.c.h.b16 %v1520
        %v1686 = vunpack.c.l.b16 %v1521
        %v1687 = vunpack.c.h.b16 %v1521
        %v1688 = vunpack.c.l.b16 %v1522
        %v1689 = vunpack.c.h.b16 %v1522
        %v1690 = vunpack.c.l.b16 %v1523
        %v1691 = vunpack.c.h.b16 %v1523
        %v1692 = vunpack.c.l.b16 %v1524
        %v1693 = vunpack.c.h.b16 %v1524
        %v1694 = vunpack.c.l.b16 %v1525
        %v1695 = vunpack.c.h.b16 %v1525
        %v1696 = vunpack.c.l.b16 %v1526
        %v1697 = vunpack.c.h.b16 %v1526
        %v1698 = vunpack.c.l.b16 %v1527
        %v1699 = vunpack.c.h.b16 %v1527
        %v1700 = vunpack.c.l.b16 %v1528
        %v1701 = vunpack.c.h.b16 %v1528
        %v1702 = vunpack.c.l.b16 %v1529
        %v1703 = vunpack.c.h.b16 %v1529
        %v1704 = vunpack.c.l.b16 %v1530
        %v1705 = vunpack.c.h.b16 %v1530
        %v1706 = vunpack.c.l.b16 %v1531
        %v1707 = vunpack.c.h.b16 %v1531
        %v1708 = vunpack.c.l.b16 %v1532
        %v1709 = vunpack.c.h.b16 %v1532
        %v1710 = vunpack.c.l.b16 %v1533
        %v1711 = vunpack.c.h.b16 %v1533
        %v1712 = vunpack.c.l.b16 %v1534
        %v1713 = vunpack.c.h.b16 %v1534
        %v1714 = vunpack.c.l.b16 %v1535
        %v1715 = vunpack.c.h.b16 %v1535
        %v1716 = vunpack.c.l.b16 %v1536
        %v1717 = vunpack.c.h.b16 %v1536
        %v1718 = vunpack.c.l.b16 %v1537
        %v1719 = vunpack.c.h.b16 %v1537
        %v1720 = vunpack.c.l.b16 %v1538
        %v1721 = vunpack.c.h.b16 %v1538
        %v1722 = vunpack.c.l.b16 %v1539
        %v1723 = vunpack.c.h.b16 %v1539
        %v1724 = vunpack.c.l.b16 %v1540
        %v1725 = vunpack.c.h.b16 %v1540
        %v1726 = vunpack.c.l.b16 %v1541
        %v1727 = vunpack.c.h.b16 %v1541
        %v1728 = vunpack.c.l.b16 %v1542
        %v1729 = vunpack.c.h.b16 %v1542
        %v1730 = vunpack.c.l.b16 %v1543
        %v1731 = vunpack.c.h.b16 %v1543
        %v1732 = vunpack.c.l.b16 %v1544
        %v1733 = vunpack.c.h.b16 %v1544
        %v1734 = vunpack.c.l.b16 %v1545
        %v1735 = vunpack.c.h.b16 %v1545
        %v1736 = vunpack.c.l.b16 %v1546
        %v1737 = vunpack.c.h.b16 %v1546
        %v1738 = vunpack.c.l.b16 %v1547
        %v1739 = vunpack.c.h.b16 %v1547
        %v1740 = vunpack.c.l.b16 %v1548
        %v1741 = vunpack.c.h.b16 %v1548
        %v1742 = vunpack.c.l.b16 %v1549
        %v1743 = vunpack.c.h.b16 %v1549
        %v1744 = vunpack.c.l.b16 %v1550
        %v1745 = vunpack.c.h.b16 %v1550
        %v1746 = vunpack.c.l.b16 %v1551
        %v1747 = vunpack.c.h.b16 %v1551
        %v1748 = vunpack.c.l.b16 %v1552
        %v1749 = vunpack.c.h.b16 %v1552
        %v1750 = vunpack.c.l.b16 %v1553
        %v1751 = vunpack.c.h.b16 %v1553
        %v1752 = vunpack.c.l.b16 %v1554
        %v1753 = vunpack.c.h.b16 %v1554
        %v1754 = vunpack.c.l.b16 %v1555
        %v1755 = vunpack.c.h.b16 %v1555
        %v1756 = vunpack.c.l.b16 %v1556
        %v1757 = vunpack.c.h.b16 %v1556
        %v1758 = vunpack.c.l.b16 %v1557
        %v1759 = vunpack.c.h.b16 %v1557
        %v1760 = vunpack.c.l.b16 %v1558
        %v1761 = vunpack.c.h.b16 %v1558
        %v1762 = vunpack.c.l.b16 %v1559
        %v1763 = vunpack.c.h.b16 %v1559
        %v1764 = vpack.c.b16 %v1638, %v1636
        %v1765 = vpack.c.b16 %v1639, %v1637
        %v1766 = vpack.c.b16 %v1642, %v1640
        %v1767 = vpack.c.b16 %v1643, %v1641
        %v1768 = vpack.c.b16 %v1646, %v1644
        %v1769 = vpack.c.b16 %v1647, %v1645
        %v1770 = vpack.c.b16 %v1650, %v1648
        %v1771 = vpack.c.b16 %v1651, %v1649
        %v1772 = vpack.c.b16 %v1654, %v1652
        %v1773 = vpack.c.b16 %v1655, %v1653
        %v1774 = vpack.c.b16 %v1658, %v1656
        %v1775 = vpack.c.b16 %v1659, %v1657
        %v1776 = vpack.c.b16 %v1662, %v1660
        %v1777 = vpack.c.b16 %v1663, %v1661
        %v1778 = vpack.c.b16 %v1666, %v1664
        %v1779 = vpack.c.b16 %v1667, %v1665
        %v1780 = vpack.c.b16 %v1670, %v1668
        %v1781 = vpack.c.b16 %v1671, %v1669
        %v1782 = vpack.c.b16 %v1674, %v1672
        %v1783 = vpack.c.b16 %v1675, %v1673
        %v1784 = vpack.c.b16 %v1678, %v1676
        %v1785 = vpack.c.b16 %v1679, %v1677
        %v1786 = vpack.c.b16 %v1682, %v1680
        %v1787 = vpack.c.b16 %v1683, %v1681
        %v1788 = vpack.c.b16 %v1686, %v1684
        %v1789 = vpack.c.b16 %v1687, %v1685
        %v1790 = vpack.c.b16 %v1690, %v1688
        %v1791 = vpack.c.b16 %v1691, %v1689
        %v1792 = vpack.c.b16 %v1694, %v1692
        %v1793 = vpack.c.b16 %v1695, %v1693
        %v1794 = vpack.c.b16 %v1698, %v1696
        %v1795 = vpack.c.b16 %v1699, %v1697
        %v1796 = vpack.c.b16 %v1702, %v1700
        %v1797 = vpack.c.b16 %v1703, %v1701
        %v1798 = vpack.c.b16 %v1706, %v1704
        %v1799 = vpack.c.b16 %v1707, %v1705
        %v1800 = vpack.c.b16 %v1710, %v1708
        %v1801 = vpack.c.b16 %v1711, %v1709
        %v1802 = vpack.c.b16 %v1714, %v1712
        %v1803 = vpack.c.b16 %v1715, %v1713
        %v1804 = vpack.c.b16 %v1718, %v1716
        %v1805 = vpack.c.b16 %v1719, %v1717
        %v1806 = vpack.c.b16 %v1722, %v1720
        %v1807 = vpack.c.b16 %v1723, %v1721
        %v1808 = vpack.c.b16 %v1726, %v1724
        %v1809 = vpack.c.b16 %v1727, %v1725
        %v1810 = vpack.c.b16 %v1730, %v1728
        %v1811 = vpack.c.b16 %v1731, %v1729
        %v1812 = vpack.c.b16 %v1734, %v1732
        %v1813 = vpack.c.b16 %v1735, %v1733
        %v1814 = vpack.c.b16 %v1738, %v1736
        %v1815 = vpack.c.b16 %v1739, %v1737
        %v1816 = vpack.c.b16 %v1742, %v1740
        %v1817 = vpack.c.b16 %v1743, %v1741
        %v1818 = vpack.c.b16 %v1746, %v1744
        %v1819 = vpack.c.b16 %v1747, %v1745
        %v1820 = vpack.c.b16 %v1750, %v1748
        %v1821 = vpack.c.b16 %v1751, %v1749
        %v1822 = vpack.c.b16 %v1754, %v1752
        %v1823 = vpack.c.b16 %v1755, %v1753
        %v1824 = vpack.c.b16 %v1758, %v1756
        %v1825 = vpack.c.b16 %v1759, %v1757
        %v1826 = vpack.c.b16 %v1762, %v1760
        %v1827 = vpack.c.b16 %v1763, %v1761
        %1892 = vmatprep.subr.bf16.mxu0 %v1765
        %1893 = vmatpush1.bf16.msra.mxu0 %v1764
        %1894 = vmatprep.subr.bf16.mxu0 %v1767
        %1895 = vmatpush1.bf16.msra.mxu0 %v1766
        %1896 = vmatprep.subr.bf16.mxu0 %v1769
        %1897 = vmatpush1.bf16.msra.mxu0 %v1768
        %1898 = vmatprep.subr.bf16.mxu0 %v1771
        %1899 = vmatpush1.bf16.msra.mxu0 %v1770
        %1900 = vmatprep.subr.bf16.mxu0 %v1773
        %1901 = vmatpush1.bf16.msra.mxu0 %v1772
        %1902 = vmatprep.subr.bf16.mxu0 %v1775
        %1903 = vmatpush1.bf16.msra.mxu0 %v1774
        %1904 = vmatprep.subr.bf16.mxu0 %v1777
        %1905 = vmatpush1.bf16.msra.mxu0 %v1776
        %1906 = vmatprep.subr.bf16.mxu0 %v1779
        %1907 = vmatpush1.bf16.msra.mxu0 %v1778
        %1908 = vmatprep.subr.bf16.mxu0 %v1781
        %1909 = vmatpush1.bf16.msra.mxu0 %v1780
        %1910 = vmatprep.subr.bf16.mxu0 %v1783
        %1911 = vmatpush1.bf16.msra.mxu0 %v1782
        %1912 = vmatprep.subr.bf16.mxu0 %v1785
        %1913 = vmatpush1.bf16.msra.mxu0 %v1784
        %1914 = vmatprep.subr.bf16.mxu0 %v1787
        %1915 = vmatpush1.bf16.msra.mxu0 %v1786
        %1916 = vmatprep.subr.bf16.mxu0 %v1789
        %1917 = vmatpush1.bf16.msra.mxu0 %v1788
        %1918 = vmatprep.subr.bf16.mxu0 %v1791
        %1919 = vmatpush1.bf16.msra.mxu0 %v1790
        %1920 = vmatprep.subr.bf16.mxu0 %v1793
        %1921 = vmatpush1.bf16.msra.mxu0 %v1792
        %1922 = vmatprep.subr.bf16.mxu0 %v1795
        %1923 = vmatpush1.bf16.msra.mxu0 %v1794
        %1924 = vmatprep.mubr.bf16.mxu0 %v1465
        %1925 = vmatmul.mubr.bf16.gmra.mrb[0].mxu0 %v1464
        %v1926 = vpop.f32.mrb[0].mxu0
        %v1927 = vadd.f32 %v1565, %v1926
        %v1928 = vpop.f32.mrb[0].mxu0
        %v1929 = vadd.f32 %v1569, %v1928
        %v1930 = vpop.f32.mrb[0].mxu0
        %v1931 = vadd.f32 %v1565, %v1930
        %v1932 = vpop.f32.mrb[0].mxu0
        %v1933 = vadd.f32 %v1569, %v1932
        %1934 = vmatprep.mubr.bf16.mxu0 %v1469
        %1935 = vmatmul.mubr.bf16.gmra.mrb[0].mxu0 %v1468
        %v1936 = vpop.f32.mrb[0].mxu0
        %v1937 = vadd.f32 %v1565, %v1936
        %v1938 = vpop.f32.mrb[0].mxu0
        %v1939 = vadd.f32 %v1569, %v1938
        %v1940 = vpop.f32.mrb[0].mxu0
        %v1941 = vadd.f32 %v1565, %v1940
        %v1942 = vpop.f32.mrb[0].mxu0
        %v1943 = vadd.f32 %v1569, %v1942
        %1944 = vmatprep.mubr.bf16.mxu0 %v1473
        %1945 = vmatmul.mubr.bf16.gmra.mrb[0].mxu0 %v1472
        %v1946 = vpop.f32.mrb[0].mxu0
        %v1947 = vadd.f32 %v1565, %v1946
        %v1948 = vpop.f32.mrb[0].mxu0
        %v1949 = vadd.f32 %v1569, %v1948
        %v1950 = vpop.f32.mrb[0].mxu0
        %v1951 = vadd.f32 %v1565, %v1950
        %v1952 = vpop.f32.mrb[0].mxu0
        %v1953 = vadd.f32 %v1569, %v1952
        %1954 = vmatprep.mubr.bf16.mxu0 %v1477
        %1955 = vmatmul.mubr.bf16.gmra.mrb[0].mxu0 %v1476
        %v1956 = vpop.f32.mrb[0].mxu0
        %v1957 = vadd.f32 %v1565, %v1956
        %v1958 = vpop.f32.mrb[0].mxu0
        %v1959 = vadd.f32 %v1569, %v1958
        %v1960 = vpop.f32.mrb[0].mxu0
        %v1961 = vadd.f32 %v1565, %v1960
        %v1962 = vpop.f32.mrb[0].mxu0
        %v1963 = vadd.f32 %v1569, %v1962
        %1964 = vmatprep.mubr.bf16.mxu0 %v1481
        %1965 = vmatmul.mubr.bf16.gmra.mrb[0].mxu0 %v1480
        %v1966 = vpop.f32.mrb[0].mxu0
        %v1967 = vadd.f32 %v1565, %v1966
        %v1968 = vpop.f32.mrb[0].mxu0
        %v1969 = vadd.f32 %v1569, %v1968
        %v1970 = vpop.f32.mrb[0].mxu0
        %v1971 = vadd.f32 %v1565, %v1970
        %v1972 = vpop.f32.mrb[0].mxu0
        %v1973 = vadd.f32 %v1569, %v1972
        %1974 = vmatprep.mubr.bf16.mxu0 %v1485
        %1975 = vmatmul.mubr.bf16.gmra.mrb[0].mxu0 %v1484
        %v1976 = vpop.f32.mrb[0].mxu0
        %v1977 = vadd.f32 %v1565, %v1976
        %v1978 = vpop.f32.mrb[0].mxu0
        %v1979 = vadd.f32 %v1569, %v1978
        %v1980 = vpop.f32.mrb[0].mxu0
        %v1981 = vadd.f32 %v1565, %v1980
        %v1982 = vpop.f32.mrb[0].mxu0
        %v1983 = vadd.f32 %v1569, %v1982
        %1984 = vmatprep.mubr.bf16.mxu0 %v1489
        %1985 = vmatmul.mubr.bf16.gmra.mrb[0].mxu0 %v1488
        %v1986 = vpop.f32.mrb[0].mxu0
        %v1987 = vadd.f32 %v1565, %v1986
        %v1988 = vpop.f32.mrb[0].mxu0
        %v1989 = vadd.f32 %v1569, %v1988
        %v1990 = vpop.f32.mrb[0].mxu0
        %v1991 = vadd.f32 %v1565, %v1990
        %v1992 = vpop.f32.mrb[0].mxu0
        %v1993 = vadd.f32 %v1569, %v1992
        %1994 = vmatprep.mubr.bf16.mxu0 %v1493
        %1995 = vmatmul.mubr.bf16.gmra.mrb[0].mxu0 %v1492
        %v1996 = vpop.f32.mrb[0].mxu0
        %v1997 = vadd.f32 %v1565, %v1996
        %v1998 = vpop.f32.mrb[0].mxu0
        %v1999 = vadd.f32 %v1569, %v1998
        %v2000 = vpop.f32.mrb[0].mxu0
        %v2001 = vadd.f32 %v1565, %v2000
        %v2002 = vpop.f32.mrb[0].mxu0
        %v2003 = vadd.f32 %v1569, %v2002
        %2004 = vdwg.mxu0
        %2005 = vmatprep.subr.bf16.mxu0 %v1797
        %2006 = vmatpush1.bf16.msra.mxu0 %v1796
        %2007 = vmatprep.subr.bf16.mxu0 %v1799
        %2008 = vmatpush1.bf16.msra.mxu0 %v1798
        %2009 = vmatprep.subr.bf16.mxu0 %v1801
        %2010 = vmatpush1.bf16.msra.mxu0 %v1800
        %2011 = vmatprep.subr.bf16.mxu0 %v1803
        %2012 = vmatpush1.bf16.msra.mxu0 %v1802
        %2013 = vmatprep.subr.bf16.mxu0 %v1805
        %2014 = vmatpush1.bf16.msra.mxu0 %v1804
        %2015 = vmatprep.subr.bf16.mxu0 %v1807
        %2016 = vmatpush1.bf16.msra.mxu0 %v1806
        %2017 = vmatprep.subr.bf16.mxu0 %v1809
        %2018 = vmatpush1.bf16.msra.mxu0 %v1808
        %2019 = vmatprep.subr.bf16.mxu0 %v1811
        %2020 = vmatpush1.bf16.msra.mxu0 %v1810
        %2021 = vmatprep.subr.bf16.mxu0 %v1813
        %2022 = vmatpush1.bf16.msra.mxu0 %v1812
        %2023 = vmatprep.subr.bf16.mxu0 %v1815
        %2024 = vmatpush1.bf16.msra.mxu0 %v1814
        %2025 = vmatprep.subr.bf16.mxu0 %v1817
        %2026 = vmatpush1.bf16.msra.mxu0 %v1816
        %2027 = vmatprep.subr.bf16.mxu0 %v1819
        %2028 = vmatpush1.bf16.msra.mxu0 %v1818
        %2029 = vmatprep.subr.bf16.mxu0 %v1821
        %2030 = vmatpush1.bf16.msra.mxu0 %v1820
        %2031 = vmatprep.subr.bf16.mxu0 %v1823
        %2032 = vmatpush1.bf16.msra.mxu0 %v1822
        %2033 = vmatprep.subr.bf16.mxu0 %v1825
        %2034 = vmatpush1.bf16.msra.mxu0 %v1824
        %2035 = vmatprep.subr.bf16.mxu0 %v1827
        %2036 = vmatpush1.bf16.msra.mxu0 %v1826
        %2037 = vmatprep.mubr.bf16.mxu0 %v1467
        %2038 = vmatmul.mubr.bf16.gmra.mrb[0].mxu0 %v1466
        %v2039 = vpop.f32.mrb[0].mxu0
        %v2040 = vadd.f32 %v1927, %v2039
        %v2041 = vpop.f32.mrb[0].mxu0
        %v2042 = vadd.f32 %v1929, %v2041
        %v2043 = vpop.f32.mrb[0].mxu0
        %v2044 = vadd.f32 %v1931, %v2043
        %v2045 = vpop.f32.mrb[0].mxu0
        %v2046 = vadd.f32 %v1933, %v2045
        %2047 = vmatprep.mubr.bf16.mxu0 %v1471
        %2048 = vmatmul.mubr.bf16.gmra.mrb[0].mxu0 %v1470
        %v2049 = vpop.f32.mrb[0].mxu0
        %v2050 = vadd.f32 %v1937, %v2049
        %v2051 = vpop.f32.mrb[0].mxu0
        %v2052 = vadd.f32 %v1939, %v2051
        %v2053 = vpop.f32.mrb[0].mxu0
        %v2054 = vadd.f32 %v1941, %v2053
        %v2055 = vpop.f32.mrb[0].mxu0
        %v2056 = vadd.f32 %v1943, %v2055
        %2057 = vmatprep.mubr.bf16.mxu0 %v1475
        %2058 = vmatmul.mubr.bf16.gmra.mrb[0].mxu0 %v1474
        %v2059 = vpop.f32.mrb[0].mxu0
        %v2060 = vadd.f32 %v1947, %v2059
        %v2061 = vpop.f32.mrb[0].mxu0
        %v2062 = vadd.f32 %v1949, %v2061
        %v2063 = vpop.f32.mrb[0].mxu0
        %v2064 = vadd.f32 %v1951, %v2063
        %v2065 = vpop.f32.mrb[0].mxu0
        %v2066 = vadd.f32 %v1953, %v2065
        %2067 = vmatprep.mubr.bf16.mxu0 %v1479
        %2068 = vmatmul.mubr.bf16.gmra.mrb[0].mxu0 %v1478
        %v2069 = vpop.f32.mrb[0].mxu0
        %v2070 = vadd.f32 %v1957, %v2069
        %v2071 = vpop.f32.mrb[0].mxu0
        %v2072 = vadd.f32 %v1959, %v2071
        %v2073 = vpop.f32.mrb[0].mxu0
        %v2074 = vadd.f32 %v1961, %v2073
        %v2075 = vpop.f32.mrb[0].mxu0
        %v2076 = vadd.f32 %v1963, %v2075
        %2077 = vmatprep.mubr.bf16.mxu0 %v1483
        %2078 = vmatmul.mubr.bf16.gmra.mrb[0].mxu0 %v1482
        %v2079 = vpop.f32.mrb[0].mxu0
        %v2080 = vadd.f32 %v1967, %v2079
        %v2081 = vpop.f32.mrb[0].mxu0
        %v2082 = vadd.f32 %v1969, %v2081
        %v2083 = vpop.f32.mrb[0].mxu0
        %v2084 = vadd.f32 %v1971, %v2083
        %v2085 = vpop.f32.mrb[0].mxu0
        %v2086 = vadd.f32 %v1973, %v2085
        %2087 = vmatprep.mubr.bf16.mxu0 %v1487
        %2088 = vmatmul.mubr.bf16.gmra.mrb[0].mxu0 %v1486
        %v2089 = vpop.f32.mrb[0].mxu0
        %v2090 = vadd.f32 %v1977, %v2089
        %v2091 = vpop.f32.mrb[0].mxu0
        %v2092 = vadd.f32 %v1979, %v2091
        %v2093 = vpop.f32.mrb[0].mxu0
        %v2094 = vadd.f32 %v1981, %v2093
        %v2095 = vpop.f32.mrb[0].mxu0
        %v2096 = vadd.f32 %v1983, %v2095
        %2097 = vmatprep.mubr.bf16.mxu0 %v1491
        %2098 = vmatmul.mubr.bf16.gmra.mrb[0].mxu0 %v1490
        %v2099 = vpop.f32.mrb[0].mxu0
        %v2100 = vadd.f32 %v1987, %v2099
        %v2101 = vpop.f32.mrb[0].mxu0
        %v2102 = vadd.f32 %v1989, %v2101
        %v2103 = vpop.f32.mrb[0].mxu0
        %v2104 = vadd.f32 %v1991, %v2103
        %v2105 = vpop.f32.mrb[0].mxu0
        %v2106 = vadd.f32 %v1993, %v2105
        %2107 = vmatprep.mubr.bf16.mxu0 %v1495
        %2108 = vmatmul.mubr.bf16.gmra.mrb[0].mxu0 %v1494
        %v2109 = vpop.f32.mrb[0].mxu0
        %v2110 = vadd.f32 %v1997, %v2109
        %v2111 = vpop.f32.mrb[0].mxu0
        %v2112 = vadd.f32 %v1999, %v2111
        %v2113 = vpop.f32.mrb[0].mxu0
        %v2114 = vadd.f32 %v2001, %v2113
        %v2115 = vpop.f32.mrb[0].mxu0
        %v2116 = vadd.f32 %v2003, %v2115
        %2117 = vdwg.mxu0
        %2118 = vst [vmem:[%s304] sm:$0xff] %v2040
        %2119 = vst [vmem:[%s304 + $0x8] sm:$0xff] %v2042
        %2120 = vst [vmem:[%s304 + $0x10] sm:$0xff] %v2044
        %2121 = vst [vmem:[%s304 + $0x18] sm:$0xff] %v2046
        %2122 = vst [vmem:[%s304 + $0x20] sm:$0xff] %v2050
        %2123 = vst [vmem:[%s304 + $0x28] sm:$0xff] %v2052
        %2124 = vst [vmem:[%s304 + $0x30] sm:$0xff] %v2054
        %2125 = vst [vmem:[%s304 + $0x38] sm:$0xff] %v2056
        %2126 = vst [vmem:[%s304 + $0x40] sm:$0xff] %v2060
        %2127 = vst [vmem:[%s304 + $0x48] sm:$0xff] %v2062
        %2128 = vst [vmem:[%s304 + $0x50] sm:$0xff] %v2064
        %2129 = vst [vmem:[%s304 + $0x58] sm:$0xff] %v2066
        %2130 = vst [vmem:[%s304 + $0x60] sm:$0xff] %v2070
        %2131 = vst [vmem:[%s304 + $0x68] sm:$0xff] %v2072
        %2132 = vst [vmem:[%s304 + $0x70] sm:$0xff] %v2074
        %2133 = vst [vmem:[%s304 + $0x78] sm:$0xff] %v2076
        %2134 = vst [vmem:[%s304 + $0x80] sm:$0xff] %v2080
        %2135 = vst [vmem:[%s304 + $0x88] sm:$0xff] %v2082
        %2136 = vst [vmem:[%s304 + $0x90] sm:$0xff] %v2084
        %2137 = vst [vmem:[%s304 + $0x98] sm:$0xff] %v2086
        %2138 = vst [vmem:[%s304 + $0xa0] sm:$0xff] %v2090
        %2139 = vst [vmem:[%s304 + $0xa8] sm:$0xff] %v2092
        %2140 = vst [vmem:[%s304 + $0xb0] sm:$0xff] %v2094
        %2141 = vst [vmem:[%s304 + $0xb8] sm:$0xff] %v2096
        %2142 = vst [vmem:[%s304 + $0xc0] sm:$0xff] %v2100
        %2143 = vst [vmem:[%s304 + $0xc8] sm:$0xff] %v2102
        %2144 = vst [vmem:[%s304 + $0xd0] sm:$0xff] %v2104
        %2145 = vst [vmem:[%s304 + $0xd8] sm:$0xff] %v2106
        %2146 = vst [vmem:[%s304 + $0xe0] sm:$0xff] %v2110
        %2147 = vst [vmem:[%s304 + $0xe8] sm:$0xff] %v2112
        %2148 = vst [vmem:[%s304 + $0xf0] sm:$0xff] %v2114
        %2149 = vst [vmem:[%s304 + $0xf8] sm:$0xff] %v2116
        %s2150 = sand.u32 %s142, 1
        %s2151 = scalar_lea.sflag [#allocation4], %s2150
        %s2152 = sand.u32 %s142, 1
        %s2153 = smul.addr %s2152, 256
        %s2154 = scalar_lea.vmem [#allocation11], %s2153
        // Predicated region
        $region61: #{tpu_custom_call.1} parent=39 // pred_check
          %p2155 = pneg %p152
        $region62: #{tpu_custom_call.1} parent=39 // pred_check_branch
          %2157 = sbr.rel (%p2155) target = $region64
        $region63: #{tpu_custom_call.1} parent=39 // pred_region
          %s2158 = smul.u32 16, %s24
          %s2159 = ssub.s32 18, %s2158
          %p2160 = scmp.lt.s32.totalorder %s2159, 16
          %s2161 = scalar_select %p2160, %s2159, 16
          %s2162 = smul.u32 128, %s2161
          %s2163 = smul.u32 %s2162, 2
          %s2165 = ssub.s32 4096, %s2163
          %2166 = vsyncadd %s2151, %s2165
          %p2167 = scmp.ne.s32.totalorder 0, %s2163
          %s2168 = smul.addr %s2158, 2
          %s2169 = smul.addr %s2168, 128
          %s2170 = scalar_lea.hbm %s5, %s2169
          %s2171 = smul.u32 16, %s2161
          %s2172 = sshll.u32 %s2154, 4
          %s2173 = int_to_ptr.vmem [resolvable:$true] %s2172
          %s2174 = sshll.u32 %s2171, 4
          %2178 = dma.vmem_to_hbm [thread:$0]  (%p2167), %s2173, %s2174, %s2170, %s2151, 256, 256, 16
        $region64: #{tpu_custom_call.1} parent=39 // pred_fallthru
          _
      $region40: #{tpu_custom_call.1} parent=5 // pred_fallthru
        _
      %p2179 = scmp.le.s32.totalorder 2, %s19
      // Predicated region
      $region65: #{tpu_custom_call.1} parent=5 // pred_check
        %p2180 = pneg %p2179
      $region66: #{tpu_custom_call.1} parent=5 // pred_check_branch
        %2182 = sbr.rel (%p2180) target = $region68
      $region67: #{tpu_custom_call.1} parent=5 // pred_region
        %s2183 = ssub.s32 %s19, 2
        // Predicated region
        $region69: #{tpu_custom_call.1} parent=67 // pred_check
          %p2184 = pneg %p158
        $region70: #{tpu_custom_call.1} parent=67 // pred_check_branch
          %2186 = sbr.rel (%p2184) target = $region72
        $region71: #{tpu_custom_call.1} parent=67 // pred_region
          %s2187 = sand.u32 %s143, 1
          %s2188 = scalar_lea.sflag [#allocation4], %s2187
          %s2189 = sand.u32 %s143, 1
          %s2190 = smul.addr %s2189, 256
          %s2191 = scalar_lea.vmem [#allocation11], %s2190
          %2192 = dma.done %s2188, 4096
        $region72: #{tpu_custom_call.1} parent=67 // pred_fallthru
          _
      $region68: #{tpu_custom_call.1} parent=5 // pred_fallthru
        _
    $region6: #{tpu_custom_call.1} parent=1 // loop_footer
      %s23 = sadd.s32 1, %s19
    $region7: #{tpu_custom_call.1} parent=1 // loop_footer_branch
      %18 = sbr.rel target = $region3
    $region8: #{tpu_custom_call.1} parent=1 // loop_exit
      _
    %2193 = vsyncpa [#allocation3], 1
    %s2194 = scalar_lea.sflag [#allocation3], 1
    %2195 = vsyncpa %s2194, 1
    %2196 = vsyncpa [#allocation6], 1
    %2197 = vsyncpa [#allocation9], 1
    %2198 = vsyncpa [#allocation4], 1
    %s2199 = scalar_lea.sflag [#allocation4], 1
    %2200 = vsyncpa %s2199, 1

</llo_original>
